<compile_context>
chip_gen: v7x
topology: tpu7x:2x2x1
jax: 0.10.0
libtpu: 0.0.40
codegen_flags: <defaults>
</compile_context>

<pallas_src>
import functools

import jax
import jax.numpy as jnp
from jax.experimental import pallas as pl
from jax.experimental.pallas import tpu as pltpu


def _round_up(x, m):
    return ((x + m - 1) // m) * m


# -----------------------------------------------------------------------------
# Kernel 1: fused FILIP encoder FFN stack on (N, Din) -> (N, E)
#   projection -> (h1-1) x [Linear, ReLU, LayerNorm, Dropout(id)] -> Linear
#   -> L2 normalize (+ eps) -> * scale   (scale = 1/temperature for peptides)
#
# All weights are bf16 (MXU operands); biases / gamma / beta / LN stats f32.
# The same kernel body serves both encoders; the grid's leading axis selects
# which stacked weight set / scale is resident.
# -----------------------------------------------------------------------------
def _encoder_kernel(x_ref, scale_ref, *refs, n_blocks):
    o_ref = refs[-1]
    w = refs[:-1]

    x = x_ref[...]                                            # (TILE, Din) bf16
    # projection (no activation)
    y = jnp.dot(x, w[0][...], preferred_element_type=jnp.float32) + w[1][...]

    # hidden blocks: Linear + ReLU + one-pass LayerNorm (Dropout = identity)
    for i in range(n_blocks):
        wi, bi, gi, bti = w[2 + 4 * i], w[3 + 4 * i], w[4 + 4 * i], w[5 + 4 * i]
        h = jnp.dot(y.astype(jnp.bfloat16), wi[...],
                    preferred_element_type=jnp.float32) + bi[...]
        h = jnp.maximum(h, 0.0)
        d = h.shape[-1]
        s1 = jnp.sum(h, axis=-1, keepdims=True)               # one-pass stats
        s2 = jnp.sum(h * h, axis=-1, keepdims=True)
        mu = s1 / d
        var = s2 / d - mu * mu
        y = (h - mu) * jax.lax.rsqrt(var + 1e-5) * gi[...] + bti[...]

    # final linear
    fw, fb = w[2 + 4 * n_blocks], w[3 + 4 * n_blocks]
    y = jnp.dot(y.astype(jnp.bfloat16), fw[...],
                preferred_element_type=jnp.float32) + fb[...]

    # fused L2 normalization (+ eps against all-zero rows) and scale fold
    inv_norm = jax.lax.rsqrt(jnp.sum(y * y, axis=-1, keepdims=True) + 1e-12)
    o_ref[...] = (y * (inv_norm * scale_ref[...])).astype(o_ref.dtype)


def _flat_encoder_params(enc):
    flat = [enc["proj_w"].astype(jnp.bfloat16), enc["proj_b"]]
    for blk in enc["aa_ffn_blocks"]:
        flat += [blk["w"].astype(jnp.bfloat16), blk["b"], blk["gamma"], blk["beta"]]
    flat += [enc["aa_final_w"].astype(jnp.bfloat16), enc["aa_final_b"]]
    return flat


def pallas_encoder_pair(xa, xb, scale_a, scale_b, enc_a, enc_b, *, row_tile=256):
    """Run both encoder stacks in ONE pallas_call.

    xa: (Na, Din), xb: (Nb, Din)   token slabs (any float dtype)
    scale_a / scale_b: (1, 1) f32  (1/temperature for peptides, 1 for receptors)
    Returns L2-normalized bf16 embeddings of shapes (Na, E) and (Nb, E).
    """
    na, din = xa.shape
    nb, _ = xb.shape
    emb = enc_a["proj_w"].shape[1]
    n_blocks = len(enc_a["aa_ffn_blocks"])
    assert len(enc_b["aa_ffn_blocks"]) == n_blocks

    # Large row tiles for MXU utilization; pad the tail instead of asserting
    # divisibility.  Both encoders share a common padded row count so they can
    # live on one grid ("parallel" -> megacore can split them across cores).
    n_max = max(na, nb)
    tile = row_tile if n_max >= row_tile else _round_up(n_max, 8)
    n_pad = _round_up(n_max, tile)

    def pad_rows(x):
        pad = n_pad - x.shape[0]
        return jnp.pad(x, ((0, pad), (0, 0))) if pad else x

    x2 = jnp.stack([pad_rows(xa), pad_rows(xb)], axis=0).astype(jnp.bfloat16)
    scales = jnp.stack([scale_a, scale_b], axis=0).astype(jnp.float32)   # (2,1,1)

    flat = [jnp.stack([a, b], axis=0)
            for a, b in zip(_flat_encoder_params(enc_a), _flat_encoder_params(enc_b))]

    in_specs = [pl.BlockSpec((None, tile, din), lambda e, i: (e, i, 0)),
                pl.BlockSpec((None, 1, 1), lambda e, i: (e, 0, 0))]
    in_specs += [pl.BlockSpec((None,) + a.shape[1:], lambda e, i: (e, 0, 0))
                 for a in flat]

    out = pl.pallas_call(
        functools.partial(_encoder_kernel, n_blocks=n_blocks),
        out_shape=jax.ShapeDtypeStruct((2, n_pad, emb), jnp.bfloat16),
        grid=(2, n_pad // tile),
        in_specs=in_specs,
        out_specs=pl.BlockSpec((None, tile, emb), lambda e, i: (e, i, 0)),
        compiler_params=pltpu.CompilerParams(
            dimension_semantics=("parallel", "parallel")),
    )(x2, scales, *flat)
    return out[0, :na], out[1, :nb]


# -----------------------------------------------------------------------------
# Kernel 2: FILIP token-wise similarity, tiled per (peptide, receptor) pair.
#   Each grid step computes only a (TA, TB) similarity tile (never the full
#   cross-batch tensor), so VMEM use is independent of batch size.  Receptor is
#   the inner grid axis so the peptide tile is not re-fetched across receptors.
#   hA already carries the 1/temperature factor (folded in the encoder).
# -----------------------------------------------------------------------------
def _filip_kernel(hA_ref, hB_ref, mA_ref, mB_ref, oA_ref, oB_ref):
    neg = jnp.finfo(jnp.float32).min
    hA = hA_ref[...]                      # (TA, D) bf16 (already / temperature)
    hB = hB_ref[...]                      # (TB, D) bf16
    mA = mA_ref[...]                      # (TA, 1) f32
    mB = mB_ref[...]                      # (1, TB) f32

    # token-token similarities on the MXU, f32 accumulation
    s = jax.lax.dot_general(hA, hB, (((1,), (1,)), ((), ())),
                            preferred_element_type=jnp.float32)   # (TA, TB)

    # sim_scores_A: mask invalid receptor tokens, max over tB, masked mean over tA
    s_a = jnp.where(mB > 0.0, s, neg)
    max_a = jnp.max(s_a, axis=1, keepdims=True)                   # (TA, 1)
    max_a = jnp.where(mA > 0.0, max_a, 0.0)
    num_a = jnp.sum(max_a, axis=0, keepdims=True)                 # (1, 1)
    den_a = jnp.maximum(jnp.sum(mA, axis=0, keepdims=True), 1e-6)
    oA_ref[...] = num_a / den_a

    # sim_scores_B: mask invalid peptide tokens, max over tA, masked mean over tB
    s_b = jnp.where(mA > 0.0, s, neg)
    max_b = jnp.max(s_b, axis=0, keepdims=True)                   # (1, TB)
    max_b = jnp.where(mB > 0.0, max_b, 0.0)
    num_b = jnp.sum(max_b, axis=1, keepdims=True)                 # (1, 1)
    den_b = jnp.maximum(jnp.sum(mB, axis=1, keepdims=True), 1e-6)
    oB_ref[...] = num_b / den_b


def pallas_filip_similarity(hA, hB, maskA, maskB):
    BA, TA, D = hA.shape
    BB, TB, _ = hB.shape
    mA = maskA.astype(jnp.float32).reshape(BA, TA, 1)   # column layout for rows
    mB = maskB.astype(jnp.float32).reshape(BB, 1, TB)   # row layout for lanes

    sim_a, sim_b = pl.pallas_call(
        _filip_kernel,
        out_shape=(jax.ShapeDtypeStruct((BA, BB, 1, 1), jnp.float32),
                   jax.ShapeDtypeStruct((BA, BB, 1, 1), jnp.float32)),
        grid=(BA, BB),
        in_specs=[
            pl.BlockSpec((None, TA, D), lambda a, b: (a, 0, 0)),
            pl.BlockSpec((None, TB, D), lambda a, b: (b, 0, 0)),
            pl.BlockSpec((None, TA, 1), lambda a, b: (a, 0, 0)),
            pl.BlockSpec((None, 1, TB), lambda a, b: (b, 0, 0)),
        ],
        out_specs=(
            pl.BlockSpec((None, None, 1, 1), lambda a, b: (a, b, 0, 0)),
            pl.BlockSpec((None, None, 1, 1), lambda a, b: (a, b, 0, 0)),
        ),
        compiler_params=pltpu.CompilerParams(
            dimension_semantics=("parallel", "parallel")),
    )(hA, hB, mA, mB)
    return sim_a.reshape(BA, BB), sim_b.reshape(BA, BB)


# -----------------------------------------------------------------------------
# Model glue (parameter init + forward)
# -----------------------------------------------------------------------------
def _init_linear(key, din, dout, scale=0.1):
    kw, kb = jax.random.split(key)
    w = jax.random.normal(kw, (din, dout), jnp.float32) * scale
    b = jax.random.normal(kb, (1, dout), jnp.float32) * scale
    return w, b


def init_encoder(key, input_dim, embedding_dim, h1):
    keys = jax.random.split(key, h1 + 1)
    proj_w, proj_b = _init_linear(keys[0], input_dim, embedding_dim)
    blocks = []
    for i in range(h1 - 1):
        w, b = _init_linear(keys[1 + i], embedding_dim, embedding_dim)
        blocks.append({"w": w, "b": b,
                       "gamma": jnp.ones((1, embedding_dim), jnp.float32),
                       "beta": jnp.zeros((1, embedding_dim), jnp.float32)})
    fw, fb = _init_linear(keys[h1], embedding_dim, embedding_dim)
    return {"proj_w": proj_w, "proj_b": proj_b, "aa_ffn_blocks": blocks,
            "aa_final_w": fw, "aa_final_b": fb}


def extended_filip_forward(params, pep_ids, pep_mask, rec_ids, rec_mask):
    # Stand-in for esm_model(input_ids, attention_mask).last_hidden_state.
    # TODO(synk): real pretrained ESM transformer is not replicated here.
    esm = params["esm_table"]
    h_pep = esm[pep_ids]                                   # (BA, TA, Din)
    h_rec = esm[rec_ids]                                   # (BB, TB, Din)
    BA, TA, Din = h_pep.shape
    BB, TB, _ = h_rec.shape

    # 1/temperature is folded into the (L2-normalized) peptide embeddings so the
    # FILIP kernel never divides the (TA, TB) similarity tiles.
    inv_temp = jnp.reshape(1.0 / params["temperature"], (1, 1)).astype(jnp.float32)
    one = jnp.ones((1, 1), jnp.float32)

    pep_flat, rec_flat = pallas_encoder_pair(
        h_pep.reshape(BA * TA, Din), h_rec.reshape(BB * TB, Din),
        inv_temp, one, params["pep"], params["rec"])
    pep_emb = pep_flat.reshape(BA, TA, -1)
    rec_emb = rec_flat.reshape(BB, TB, -1)
    return pallas_filip_similarity(pep_emb, rec_emb, pep_mask, rec_mask)


# -----------------------------------------------------------------------------
# Pure-JAX reference (mirrors the kernel's bf16-MXU / f32-accumulate precision
# policy so the check validates the Pallas implementation itself)
# -----------------------------------------------------------------------------
def _ref_encoder(enc, esm_table, input_ids, scale):
    h = esm_table[input_ids]
    y = jnp.dot(h.astype(jnp.bfloat16), enc["proj_w"].astype(jnp.bfloat16),
                preferred_element_type=jnp.float32) + enc["proj_b"]
    for blk in enc["aa_ffn_blocks"]:
        hh = jnp.dot(y.astype(jnp.bfloat16), blk["w"].astype(jnp.bfloat16),
                     preferred_element_type=jnp.float32) + blk["b"]
        hh = jnp.maximum(hh, 0.0)
        d = hh.shape[-1]
        mu = jnp.sum(hh, -1, keepdims=True) / d
        var = jnp.sum(hh * hh, -1, keepdims=True) / d - mu * mu
        y = (hh - mu) * jax.lax.rsqrt(var + 1e-5) * blk["gamma"] + blk["beta"]
    y = jnp.dot(y.astype(jnp.bfloat16), enc["aa_final_w"].astype(jnp.bfloat16),
                preferred_element_type=jnp.float32) + enc["aa_final_b"]
    inv_norm = jax.lax.rsqrt(jnp.sum(y * y, -1, keepdims=True) + 1e-12)
    return (y * (inv_norm * scale)).astype(jnp.bfloat16)


def _ref_forward(params, pep_ids, pep_mask, rec_ids, rec_mask):
    inv_temp = jnp.reshape(1.0 / params["temperature"], (1, 1)).astype(jnp.float32)
    one = jnp.ones((1, 1), jnp.float32)
    hA = _ref_encoder(params["pep"], params["esm_table"], pep_ids, inv_temp)
    hB = _ref_encoder(params["rec"], params["esm_table"], rec_ids, one)
    sim = jnp.einsum("atd,bsd->abts", hA, hB,
                     preferred_element_type=jnp.float32)
    mA = pep_mask.astype(bool)
    mB = rec_mask.astype(bool)
    cm = mA[:, None, :, None] & mB[None, :, None, :]
    neg = jnp.finfo(jnp.float32).min
    simm = jnp.where(cm, sim, neg)
    sA = jnp.where(mA[:, None, :], simm.max(axis=-1), 0.0)
    sB = jnp.where(mB[None, :, :], simm.max(axis=-2), 0.0)
    dA = jnp.maximum(mA.sum(-1).astype(jnp.float32), 1e-6)[:, None]
    dB = jnp.maximum(mB.sum(-1).astype(jnp.float32), 1e-6)[None, :]
    return sA.sum(-1) / dA, sB.sum(-1) / dB


# -----------------------------------------------------------------------------
if __name__ == "__main__":
    # small shapes consistent with the module
    B, T = 2, 8
    INPUT_DIM, EMBEDDING_DIM = 32, 32
    H1, H2, DROPOUT = 2, 3, 0.1    # h2 / dropout unused in the forward pass
    VOCAB = 20

    key = jax.random.PRNGKey(0)
    k_esm, k_pep, k_rec, k_ids1, k_ids2 = jax.random.split(key, 5)

    params = {
        "esm_table": jax.random.normal(k_esm, (VOCAB, INPUT_DIM), jnp.float32) * 0.1,
        "pep": init_encoder(k_pep, INPUT_DIM, EMBEDDING_DIM, H1),
        "rec": init_encoder(k_rec, INPUT_DIM, EMBEDDING_DIM, H1),
        "temperature": jnp.float32(1.0),   # nn.Parameter(torch.tensor(1.0))
    }

    pep_ids = jax.random.randint(k_ids1, (B, T), 0, VOCAB)
    rec_ids = jax.random.randint(k_ids2, (B, T), 0, VOCAB)
    pep_mask = jnp.array([[1, 1, 1, 1, 1, 1, 1, 1],
                          [1, 1, 1, 1, 1, 0, 0, 0]], jnp.float32)
    rec_mask = jnp.array([[1, 1, 1, 1, 1, 1, 0, 0],
                          [1, 1, 1, 1, 1, 1, 1, 1]], jnp.float32)

    fwd = jax.jit(extended_filip_forward)
    sim_A, sim_B = fwd(params, pep_ids, pep_mask, rec_ids, rec_mask)
    sim_A = jax.block_until_ready(sim_A)
    sim_B = jax.block_until_ready(sim_B)

    ref_A, ref_B = _ref_forward(params, pep_ids, pep_mask, rec_ids, rec_mask)
    assert jnp.allclose(sim_A, ref_A, rtol=1e-2, atol=1e-2), (sim_A, ref_A)
    assert jnp.allclose(sim_B, ref_B, rtol=1e-2, atol=1e-2), (sim_B, ref_B)

    print("KERNEL_OK")
</pallas_src>

<mosaic_0001>
module attributes {stable_mosaic.version = 11 : i64} {
  func.func @_encoder_kernel(%arg0: i32, %arg1: i32, %arg2: memref<1x16x32xbf16, #tpu.memory_space<vmem>>, %arg3: memref<1x1x1xf32, #tpu.memory_space<vmem>>, %arg4: memref<1x32x32xbf16, #tpu.memory_space<vmem>>, %arg5: memref<1x1x32xf32, #tpu.memory_space<vmem>>, %arg6: memref<1x32x32xbf16, #tpu.memory_space<vmem>>, %arg7: memref<1x1x32xf32, #tpu.memory_space<vmem>>, %arg8: memref<1x1x32xf32, #tpu.memory_space<vmem>>, %arg9: memref<1x1x32xf32, #tpu.memory_space<vmem>>, %arg10: memref<1x32x32xbf16, #tpu.memory_space<vmem>>, %arg11: memref<1x1x32xf32, #tpu.memory_space<vmem>>, %arg12: memref<1x16x32xbf16, #tpu.memory_space<vmem>>) attributes {dimension_semantics = [#tpu.dimension_semantics<parallel>, #tpu.dimension_semantics<parallel>], iteration_bounds = array<i64: 2, 1>, scalar_prefetch = 0 : i64, scratch_operands = 0 : i64, tpu.core_type = #tpu.core_type<tc>, window_params = [{transform_indices = @transform_0, window_bounds = array<i64: 1, 16, 32>}, {transform_indices = @transform_1, window_bounds = array<i64: 1, 1, 1>}, {transform_indices = @transform_2, window_bounds = array<i64: 1, 32, 32>}, {transform_indices = @transform_3, window_bounds = array<i64: 1, 1, 32>}, {transform_indices = @transform_4, window_bounds = array<i64: 1, 32, 32>}, {transform_indices = @transform_5, window_bounds = array<i64: 1, 1, 32>}, {transform_indices = @transform_6, window_bounds = array<i64: 1, 1, 32>}, {transform_indices = @transform_7, window_bounds = array<i64: 1, 1, 32>}, {transform_indices = @transform_8, window_bounds = array<i64: 1, 32, 32>}, {transform_indices = @transform_9, window_bounds = array<i64: 1, 1, 32>}, {transform_indices = @transform_10, window_bounds = array<i64: 1, 16, 32>}]} {
    %c0 = arith.constant 0 : index
    %c0_0 = arith.constant 0 : index
    %c0_1 = arith.constant 0 : index
    %0 = vector.load %arg2[%c0, %c0_0, %c0_1] : memref<1x16x32xbf16, #tpu.memory_space<vmem>>, vector<1x16x32xbf16>
    %1 = vector.shape_cast %0 : vector<1x16x32xbf16> to vector<16x32xbf16>
    %c0_2 = arith.constant 0 : index
    %c0_3 = arith.constant 0 : index
    %c0_4 = arith.constant 0 : index
    %2 = vector.load %arg4[%c0_2, %c0_3, %c0_4] : memref<1x32x32xbf16, #tpu.memory_space<vmem>>, vector<1x32x32xbf16>
    %3 = vector.shape_cast %2 : vector<1x32x32xbf16> to vector<32x32xbf16>
    %cst = arith.constant dense<0.000000e+00> : vector<16x32xf32>
    %4 = tpu.matmul %1, %3, %cst {dimension_numbers = #tpu.dot_dimension_numbers<[1], [0], [0], [1], [0, 0, 1, 1], [], []>} : vector<16x32xbf16>, vector<32x32xbf16>, vector<16x32xf32> -> vector<16x32xf32>
    %c0_5 = arith.constant 0 : index
    %c0_6 = arith.constant 0 : index
    %c0_7 = arith.constant 0 : index
    %5 = vector.load %arg5[%c0_5, %c0_6, %c0_7] : memref<1x1x32xf32, #tpu.memory_space<vmem>>, vector<1x1x32xf32>
    %6 = vector.shape_cast %5 : vector<1x1x32xf32> to vector<1x32xf32>
    %7 = vector.broadcast %6 : vector<1x32xf32> to vector<16x32xf32>
    %8 = arith.addf %4, %7 : vector<16x32xf32>
    %9 = arith.truncf %8 : vector<16x32xf32> to vector<16x32xbf16>
    %c0_8 = arith.constant 0 : index
    %c0_9 = arith.constant 0 : index
    %c0_10 = arith.constant 0 : index
    %10 = vector.load %arg6[%c0_8, %c0_9, %c0_10] : memref<1x32x32xbf16, #tpu.memory_space<vmem>>, vector<1x32x32xbf16>
    %11 = vector.shape_cast %10 : vector<1x32x32xbf16> to vector<32x32xbf16>
    %cst_11 = arith.constant dense<0.000000e+00> : vector<16x32xf32>
    %12 = tpu.matmul %9, %11, %cst_11 {dimension_numbers = #tpu.dot_dimension_numbers<[1], [0], [0], [1], [0, 0, 1, 1], [], []>} : vector<16x32xbf16>, vector<32x32xbf16>, vector<16x32xf32> -> vector<16x32xf32>
    %c0_12 = arith.constant 0 : index
    %c0_13 = arith.constant 0 : index
    %c0_14 = arith.constant 0 : index
    %13 = vector.load %arg7[%c0_12, %c0_13, %c0_14] : memref<1x1x32xf32, #tpu.memory_space<vmem>>, vector<1x1x32xf32>
    %14 = vector.shape_cast %13 : vector<1x1x32xf32> to vector<1x32xf32>
    %15 = vector.broadcast %14 : vector<1x32xf32> to vector<16x32xf32>
    %16 = arith.addf %12, %15 : vector<16x32xf32>
    %cst_15 = arith.constant 0.000000e+00 : f32
    %17 = vector.broadcast %cst_15 : f32 to vector<16x32xf32>
    %18 = arith.maximumf %16, %17 : vector<16x32xf32>
    %cst_16 = arith.constant dense<0.000000e+00> : vector<16xf32>
    %19 = vector.multi_reduction <add>, %18, %cst_16 [1] : vector<16x32xf32> to vector<16xf32>
    %20 = vector.shape_cast %19 : vector<16xf32> to vector<16x1xf32>
    %21 = arith.mulf %18, %18 : vector<16x32xf32>
    %cst_17 = arith.constant dense<0.000000e+00> : vector<16xf32>
    %22 = vector.multi_reduction <add>, %21, %cst_17 [1] : vector<16x32xf32> to vector<16xf32>
    %23 = vector.shape_cast %22 : vector<16xf32> to vector<16x1xf32>
    %cst_18 = arith.constant 3.200000e+01 : f32
    %24 = vector.broadcast %cst_18 : f32 to vector<16x1xf32>
    %25 = arith.divf %20, %24 : vector<16x1xf32>
    %cst_19 = arith.constant 3.200000e+01 : f32
    %26 = vector.broadcast %cst_19 : f32 to vector<16x1xf32>
    %27 = arith.divf %23, %26 : vector<16x1xf32>
    %28 = arith.mulf %25, %25 : vector<16x1xf32>
    %29 = arith.subf %27, %28 : vector<16x1xf32>
    %30 = vector.broadcast %25 : vector<16x1xf32> to vector<16x32xf32>
    %31 = arith.subf %18, %30 : vector<16x32xf32>
    %cst_20 = arith.constant 9.99999974E-6 : f32
    %32 = vector.broadcast %cst_20 : f32 to vector<16x1xf32>
    %33 = arith.addf %29, %32 : vector<16x1xf32>
    %34 = math.rsqrt %33 : vector<16x1xf32>
    %35 = vector.broadcast %34 : vector<16x1xf32> to vector<16x32xf32>
    %36 = arith.mulf %31, %35 : vector<16x32xf32>
    %c0_21 = arith.constant 0 : index
    %c0_22 = arith.constant 0 : index
    %c0_23 = arith.constant 0 : index
    %37 = vector.load %arg8[%c0_21, %c0_22, %c0_23] : memref<1x1x32xf32, #tpu.memory_space<vmem>>, vector<1x1x32xf32>
    %38 = vector.shape_cast %37 : vector<1x1x32xf32> to vector<1x32xf32>
    %39 = vector.broadcast %38 : vector<1x32xf32> to vector<16x32xf32>
    %40 = arith.mulf %36, %39 : vector<16x32xf32>
    %c0_24 = arith.constant 0 : index
    %c0_25 = arith.constant 0 : index
    %c0_26 = arith.constant 0 : index
    %41 = vector.load %arg9[%c0_24, %c0_25, %c0_26] : memref<1x1x32xf32, #tpu.memory_space<vmem>>, vector<1x1x32xf32>
    %42 = vector.shape_cast %41 : vector<1x1x32xf32> to vector<1x32xf32>
    %43 = vector.broadcast %42 : vector<1x32xf32> to vector<16x32xf32>
    %44 = arith.addf %40, %43 : vector<16x32xf32>
    %45 = arith.truncf %44 : vector<16x32xf32> to vector<16x32xbf16>
    %c0_27 = arith.constant 0 : index
    %c0_28 = arith.constant 0 : index
    %c0_29 = arith.constant 0 : index
    %46 = vector.load %arg10[%c0_27, %c0_28, %c0_29] : memref<1x32x32xbf16, #tpu.memory_space<vmem>>, vector<1x32x32xbf16>
    %47 = vector.shape_cast %46 : vector<1x32x32xbf16> to vector<32x32xbf16>
    %cst_30 = arith.constant dense<0.000000e+00> : vector<16x32xf32>
    %48 = tpu.matmul %45, %47, %cst_30 {dimension_numbers = #tpu.dot_dimension_numbers<[1], [0], [0], [1], [0, 0, 1, 1], [], []>} : vector<16x32xbf16>, vector<32x32xbf16>, vector<16x32xf32> -> vector<16x32xf32>
    %c0_31 = arith.constant 0 : index
    %c0_32 = arith.constant 0 : index
    %c0_33 = arith.constant 0 : index
    %49 = vector.load %arg11[%c0_31, %c0_32, %c0_33] : memref<1x1x32xf32, #tpu.memory_space<vmem>>, vector<1x1x32xf32>
    %50 = vector.shape_cast %49 : vector<1x1x32xf32> to vector<1x32xf32>
    %51 = vector.broadcast %50 : vector<1x32xf32> to vector<16x32xf32>
    %52 = arith.addf %48, %51 : vector<16x32xf32>
    %53 = arith.mulf %52, %52 : vector<16x32xf32>
    %cst_34 = arith.constant dense<0.000000e+00> : vector<16xf32>
    %54 = vector.multi_reduction <add>, %53, %cst_34 [1] : vector<16x32xf32> to vector<16xf32>
    %55 = vector.shape_cast %54 : vector<16xf32> to vector<16x1xf32>
    %cst_35 = arith.constant 9.99999996E-13 : f32
    %56 = vector.broadcast %cst_35 : f32 to vector<16x1xf32>
    %57 = arith.addf %55, %56 : vector<16x1xf32>
    %58 = math.rsqrt %57 : vector<16x1xf32>
    %c0_36 = arith.constant 0 : index
    %c0_37 = arith.constant 0 : index
    %c0_38 = arith.constant 0 : index
    %59 = vector.load %arg3[%c0_36, %c0_37, %c0_38] : memref<1x1x1xf32, #tpu.memory_space<vmem>>, vector<1x1x1xf32>
    %60 = vector.shape_cast %59 : vector<1x1x1xf32> to vector<1x1xf32>
    %61 = vector.broadcast %60 : vector<1x1xf32> to vector<16x1xf32>
    %62 = arith.mulf %58, %61 : vector<16x1xf32>
    %63 = vector.broadcast %62 : vector<16x1xf32> to vector<16x32xf32>
    %64 = arith.mulf %52, %63 : vector<16x32xf32>
    %65 = arith.truncf %64 : vector<16x32xf32> to vector<16x32xbf16>
    %c0_39 = arith.constant 0 : index
    %c0_40 = arith.constant 0 : index
    %c0_41 = arith.constant 0 : index
    %66 = vector.load %arg12[%c0_39, %c0_40, %c0_41] : memref<1x16x32xbf16, #tpu.memory_space<vmem>>, vector<1x16x32xbf16>
    %67 = vector.shape_cast %66 : vector<1x16x32xbf16> to vector<16x32xbf16>
    %68 = vector.shape_cast %65 : vector<16x32xbf16> to vector<1x16x32xbf16>
    tpu.vector_store %arg12[%c0_39, %c0_40, %c0_41], %68 {strides = array<i32>} : memref<1x16x32xbf16, #tpu.memory_space<vmem>>, vector<1x16x32xbf16>,
    return
  }
  func.func @transform_0(%arg0: i32, %arg1: i32) -> (i32, i32, i32) {
    %c0_i32 = arith.constant 0 : i32
    %c0_i32_0 = arith.constant 0 : i32
    return %arg0, %arg1, %c0_i32 : i32, i32, i32
  }
  func.func @transform_1(%arg0: i32, %arg1: i32) -> (i32, i32, i32) {
    %c0_i32 = arith.constant 0 : i32
    %c0_i32_0 = arith.constant 0 : i32
    %c0_i32_1 = arith.constant 0 : i32
    return %arg0, %c0_i32, %c0_i32_0 : i32, i32, i32
  }
  func.func @transform_2(%arg0: i32, %arg1: i32) -> (i32, i32, i32) {
    %c0_i32 = arith.constant 0 : i32
    %c0_i32_0 = arith.constant 0 : i32
    %c0_i32_1 = arith.constant 0 : i32
    return %arg0, %c0_i32, %c0_i32_0 : i32, i32, i32
  }
  func.func @transform_3(%arg0: i32, %arg1: i32) -> (i32, i32, i32) {
    %c0_i32 = arith.constant 0 : i32
    %c0_i32_0 = arith.constant 0 : i32
    %c0_i32_1 = arith.constant 0 : i32
    return %arg0, %c0_i32, %c0_i32_0 : i32, i32, i32
  }
  func.func @transform_4(%arg0: i32, %arg1: i32) -> (i32, i32, i32) {
    %c0_i32 = arith.constant 0 : i32
    %c0_i32_0 = arith.constant 0 : i32
    %c0_i32_1 = arith.constant 0 : i32
    return %arg0, %c0_i32, %c0_i32_0 : i32, i32, i32
  }
  func.func @transform_5(%arg0: i32, %arg1: i32) -> (i32, i32, i32) {
    %c0_i32 = arith.constant 0 : i32
    %c0_i32_0 = arith.constant 0 : i32
    %c0_i32_1 = arith.constant 0 : i32
    return %arg0, %c0_i32, %c0_i32_0 : i32, i32, i32
  }
  func.func @transform_6(%arg0: i32, %arg1: i32) -> (i32, i32, i32) {
    %c0_i32 = arith.constant 0 : i32
    %c0_i32_0 = arith.constant 0 : i32
    %c0_i32_1 = arith.constant 0 : i32
    return %arg0, %c0_i32, %c0_i32_0 : i32, i32, i32
  }
  func.func @transform_7(%arg0: i32, %arg1: i32) -> (i32, i32, i32) {
    %c0_i32 = arith.constant 0 : i32
    %c0_i32_0 = arith.constant 0 : i32
    %c0_i32_1 = arith.constant 0 : i32
    return %arg0, %c0_i32, %c0_i32_0 : i32, i32, i32
  }
  func.func @transform_8(%arg0: i32, %arg1: i32) -> (i32, i32, i32) {
    %c0_i32 = arith.constant 0 : i32
    %c0_i32_0 = arith.constant 0 : i32
    %c0_i32_1 = arith.constant 0 : i32
    return %arg0, %c0_i32, %c0_i32_0 : i32, i32, i32
  }
  func.func @transform_9(%arg0: i32, %arg1: i32) -> (i32, i32, i32) {
    %c0_i32 = arith.constant 0 : i32
    %c0_i32_0 = arith.constant 0 : i32
    %c0_i32_1 = arith.constant 0 : i32
    return %arg0, %c0_i32, %c0_i32_0 : i32, i32, i32
  }
  func.func @transform_10(%arg0: i32, %arg1: i32) -> (i32, i32, i32) {
    %c0_i32 = arith.constant 0 : i32
    %c0_i32_0 = arith.constant 0 : i32
    return %arg0, %arg1, %c0_i32 : i32, i32, i32
  }
}

module attributes {stable_mosaic.version = 11 : i64} {
  func.func @_filip_kernel(%arg0: i32, %arg1: i32, %arg2: memref<1x8x32xbf16, #tpu.memory_space<vmem>>, %arg3: memref<1x8x32xbf16, #tpu.memory_space<vmem>>, %arg4: memref<1x8x1xf32, #tpu.memory_space<vmem>>, %arg5: memref<1x1x8xf32, #tpu.memory_space<vmem>>, %arg6: memref<1x1x1x1xf32, #tpu.memory_space<vmem>>, %arg7: memref<1x1x1x1xf32, #tpu.memory_space<vmem>>) attributes {dimension_semantics = [#tpu.dimension_semantics<parallel>, #tpu.dimension_semantics<parallel>], iteration_bounds = array<i64: 2, 2>, scalar_prefetch = 0 : i64, scratch_operands = 0 : i64, tpu.core_type = #tpu.core_type<tc>, window_params = [{transform_indices = @transform_0, window_bounds = array<i64: 1, 8, 32>}, {transform_indices = @transform_1, window_bounds = array<i64: 1, 8, 32>}, {transform_indices = @transform_2, window_bounds = array<i64: 1, 8, 1>}, {transform_indices = @transform_3, window_bounds = array<i64: 1, 1, 8>}, {transform_indices = @transform_4, window_bounds = array<i64: 1, 1, 1, 1>}, {transform_indices = @transform_5, window_bounds = array<i64: 1, 1, 1, 1>}]} {
    %c0 = arith.constant 0 : index
    %c0_0 = arith.constant 0 : index
    %c0_1 = arith.constant 0 : index
    %0 = vector.load %arg2[%c0, %c0_0, %c0_1] : memref<1x8x32xbf16, #tpu.memory_space<vmem>>, vector<1x8x32xbf16>
    %1 = vector.shape_cast %0 : vector<1x8x32xbf16> to vector<8x32xbf16>
    %c0_2 = arith.constant 0 : index
    %c0_3 = arith.constant 0 : index
    %c0_4 = arith.constant 0 : index
    %2 = vector.load %arg3[%c0_2, %c0_3, %c0_4] : memref<1x8x32xbf16, #tpu.memory_space<vmem>>, vector<1x8x32xbf16>
    %3 = vector.shape_cast %2 : vector<1x8x32xbf16> to vector<8x32xbf16>
    %c0_5 = arith.constant 0 : index
    %c0_6 = arith.constant 0 : index
    %c0_7 = arith.constant 0 : index
    %4 = vector.load %arg4[%c0_5, %c0_6, %c0_7] : memref<1x8x1xf32, #tpu.memory_space<vmem>>, vector<1x8x1xf32>
    %5 = vector.shape_cast %4 : vector<1x8x1xf32> to vector<8x1xf32>
    %c0_8 = arith.constant 0 : index
    %c0_9 = arith.constant 0 : index
    %c0_10 = arith.constant 0 : index
    %6 = vector.load %arg5[%c0_8, %c0_9, %c0_10] : memref<1x1x8xf32, #tpu.memory_space<vmem>>, vector<1x1x8xf32>
    %7 = vector.shape_cast %6 : vector<1x1x8xf32> to vector<1x8xf32>
    %cst = arith.constant dense<0.000000e+00> : vector<8x8xf32>
    %8 = tpu.matmul %1, %3, %cst {dimension_numbers = #tpu.dot_dimension_numbers<[1], [1], [0], [0], [0, 0, 1, 0], [], []>} : vector<8x32xbf16>, vector<8x32xbf16>, vector<8x8xf32> -> vector<8x8xf32>
    %cst_11 = arith.constant 0.000000e+00 : f32
    %9 = vector.broadcast %cst_11 : f32 to vector<1x8xf32>
    %10 = arith.cmpf ogt, %7, %9 : vector<1x8xf32>
    %cst_12 = arith.constant -3.40282347E+38 : f32
    %11 = vector.shape_cast %10 : vector<1x8xi1> to vector<1x8xi1>
    %12 = vector.broadcast %11 : vector<1x8xi1> to vector<8x8xi1>
    %13 = vector.broadcast %cst_12 : f32 to vector<8x8xf32>
    %14 = arith.select %12, %8, %13 : vector<8x8xi1>, vector<8x8xf32>
    %cst_13 = arith.constant dense<0xFF800000> : vector<8xf32>
    %15 = vector.multi_reduction <maximumf>, %14, %cst_13 [1] : vector<8x8xf32> to vector<8xf32>
    %16 = vector.shape_cast %15 : vector<8xf32> to vector<8x1xf32>
    %cst_14 = arith.constant 0.000000e+00 : f32
    %17 = vector.broadcast %cst_14 : f32 to vector<8x1xf32>
    %18 = arith.cmpf ogt, %5, %17 : vector<8x1xf32>
    %cst_15 = arith.constant 0.000000e+00 : f32
    %19 = vector.broadcast %cst_15 : f32 to vector<8x1xf32>
    %20 = arith.select %18, %16, %19 : vector<8x1xi1>, vector<8x1xf32>
    %cst_16 = arith.constant dense<0.000000e+00> : vector<1xf32>
    %21 = vector.multi_reduction <add>, %20, %cst_16 [0] : vector<8x1xf32> to vector<1xf32>
    %22 = vector.shape_cast %21 : vector<1xf32> to vector<1x1xf32>
    %cst_17 = arith.constant dense<0.000000e+00> : vector<1xf32>
    %23 = vector.multi_reduction <add>, %5, %cst_17 [0] : vector<8x1xf32> to vector<1xf32>
    %24 = vector.shape_cast %23 : vector<1xf32> to vector<1x1xf32>
    %cst_18 = arith.constant 9.99999997E-7 : f32
    %25 = vector.broadcast %cst_18 : f32 to vector<1x1xf32>
    %26 = arith.maximumf %24, %25 : vector<1x1xf32>
    %27 = arith.divf %22, %26 : vector<1x1xf32>
    %c0_19 = arith.constant 0 : index
    %c0_20 = arith.constant 0 : index
    %c0_21 = arith.constant 0 : index
    %c0_22 = arith.constant 0 : index
    %28 = vector.load %arg6[%c0_19, %c0_20, %c0_21, %c0_22] : memref<1x1x1x1xf32, #tpu.memory_space<vmem>>, vector<1x1x1x1xf32>
    %29 = vector.shape_cast %28 : vector<1x1x1x1xf32> to vector<1x1xf32>
    %30 = vector.shape_cast %27 : vector<1x1xf32> to vector<1x1x1x1xf32>
    tpu.vector_store %arg6[%c0_19, %c0_20, %c0_21, %c0_22], %30 {strides = array<i32>} : memref<1x1x1x1xf32, #tpu.memory_space<vmem>>, vector<1x1x1x1xf32>,
    %cst_23 = arith.constant 0.000000e+00 : f32
    %31 = vector.broadcast %cst_23 : f32 to vector<8x1xf32>
    %32 = arith.cmpf ogt, %5, %31 : vector<8x1xf32>
    %cst_24 = arith.constant -3.40282347E+38 : f32
    %33 = vector.shape_cast %32 : vector<8x1xi1> to vector<8x1xi1>
    %34 = vector.broadcast %33 : vector<8x1xi1> to vector<8x8xi1>
    %35 = vector.broadcast %cst_24 : f32 to vector<8x8xf32>
    %36 = arith.select %34, %8, %35 : vector<8x8xi1>, vector<8x8xf32>
    %cst_25 = arith.constant dense<0xFF800000> : vector<8xf32>
    %37 = vector.multi_reduction <maximumf>, %36, %cst_25 [0] : vector<8x8xf32> to vector<8xf32>
    %38 = vector.shape_cast %37 : vector<8xf32> to vector<1x8xf32>
    %cst_26 = arith.constant 0.000000e+00 : f32
    %39 = vector.broadcast %cst_26 : f32 to vector<1x8xf32>
    %40 = arith.cmpf ogt, %7, %39 : vector<1x8xf32>
    %cst_27 = arith.constant 0.000000e+00 : f32
    %41 = vector.broadcast %cst_27 : f32 to vector<1x8xf32>
    %42 = arith.select %40, %38, %41 : vector<1x8xi1>, vector<1x8xf32>
    %cst_28 = arith.constant dense<0.000000e+00> : vector<1xf32>
    %43 = vector.multi_reduction <add>, %42, %cst_28 [1] : vector<1x8xf32> to vector<1xf32>
    %44 = vector.shape_cast %43 : vector<1xf32> to vector<1x1xf32>
    %cst_29 = arith.constant dense<0.000000e+00> : vector<1xf32>
    %45 = vector.multi_reduction <add>, %7, %cst_29 [1] : vector<1x8xf32> to vector<1xf32>
    %46 = vector.shape_cast %45 : vector<1xf32> to vector<1x1xf32>
    %cst_30 = arith.constant 9.99999997E-7 : f32
    %47 = vector.broadcast %cst_30 : f32 to vector<1x1xf32>
    %48 = arith.maximumf %46, %47 : vector<1x1xf32>
    %49 = arith.divf %44, %48 : vector<1x1xf32>
    %c0_31 = arith.constant 0 : index
    %c0_32 = arith.constant 0 : index
    %c0_33 = arith.constant 0 : index
    %c0_34 = arith.constant 0 : index
    %50 = vector.load %arg7[%c0_31, %c0_32, %c0_33, %c0_34] : memref<1x1x1x1xf32, #tpu.memory_space<vmem>>, vector<1x1x1x1xf32>
    %51 = vector.shape_cast %50 : vector<1x1x1x1xf32> to vector<1x1xf32>
    %52 = vector.shape_cast %49 : vector<1x1xf32> to vector<1x1x1x1xf32>
    tpu.vector_store %arg7[%c0_31, %c0_32, %c0_33, %c0_34], %52 {strides = array<i32>} : memref<1x1x1x1xf32, #tpu.memory_space<vmem>>, vector<1x1x1x1xf32>,
    return
  }
  func.func @transform_0(%arg0: i32, %arg1: i32) -> (i32, i32, i32) {
    %c0_i32 = arith.constant 0 : i32
    %c0_i32_0 = arith.constant 0 : i32
    %c0_i32_1 = arith.constant 0 : i32
    return %arg0, %c0_i32, %c0_i32_0 : i32, i32, i32
  }
  func.func @transform_1(%arg0: i32, %arg1: i32) -> (i32, i32, i32) {
    %c0_i32 = arith.constant 0 : i32
    %c0_i32_0 = arith.constant 0 : i32
    %c0_i32_1 = arith.constant 0 : i32
    return %arg1, %c0_i32, %c0_i32_0 : i32, i32, i32
  }
  func.func @transform_2(%arg0: i32, %arg1: i32) -> (i32, i32, i32) {
    %c0_i32 = arith.constant 0 : i32
    %c0_i32_0 = arith.constant 0 : i32
    %c0_i32_1 = arith.constant 0 : i32
    return %arg0, %c0_i32, %c0_i32_0 : i32, i32, i32
  }
  func.func @transform_3(%arg0: i32, %arg1: i32) -> (i32, i32, i32) {
    %c0_i32 = arith.constant 0 : i32
    %c0_i32_0 = arith.constant 0 : i32
    %c0_i32_1 = arith.constant 0 : i32
    return %arg1, %c0_i32, %c0_i32_0 : i32, i32, i32
  }
  func.func @transform_4(%arg0: i32, %arg1: i32) -> (i32, i32, i32, i32) {
    %c0_i32 = arith.constant 0 : i32
    %c0_i32_0 = arith.constant 0 : i32
    %c0_i32_1 = arith.constant 0 : i32
    return %arg0, %arg1, %c0_i32, %c0_i32_0 : i32, i32, i32, i32
  }
  func.func @transform_5(%arg0: i32, %arg1: i32) -> (i32, i32, i32, i32) {
    %c0_i32 = arith.constant 0 : i32
    %c0_i32_0 = arith.constant 0 : i32
    %c0_i32_1 = arith.constant 0 : i32
    return %arg0, %arg1, %c0_i32, %c0_i32_0 : i32, i32, i32, i32
  }
}

</mosaic_0001>

<llo_original>
// kernel: extended_filip_forward.3
$region0: #{extended_filip_forward.3}
  #allocation0 [shape = 'u32[]', space=smem, size = 0x4, offset = 0x4, fixed_abs, tag = 'smem constant byte address 0x4 - core index']
  #allocation1 [shape = 'u32[144,128]{1,0:T(1,128)}', space=vmem, size = 0x12000, scoped, tag = 'internal scratch']
  %s0 = inlined_call_operand.vmem [shape: bf16[2,8,32], index: 0, kind: input, shape index: {}]
  %s1 = inlined_call_operand.vmem [shape: bf16[2,8,32], index: 1, kind: input, shape index: {}]
  %s2 = inlined_call_operand.vmem [shape: f32[2,8,1], index: 2, kind: input, shape index: {}]
  %s3 = inlined_call_operand.vmem [shape: f32[2,1,8], index: 3, kind: input, shape index: {}]
  %s4 = inlined_call_operand.vmem [shape: f32[2,2,1,1], index: 4, kind: output, shape index: {0}]
  %s5 = inlined_call_operand.vmem [shape: f32[2,2,1,1], index: 5, kind: output, shape index: {1}]
  %6 = xla_tuple %s4, %s5
  %s7 = sld [smem:[#allocation0]]
  $region57: #{extended_filip_forward.3} parent=0
    _
  %s9 = ssub.s32 1, %s7
  %s10 = scalar_select 0, %s9, %s7
  loop: start=0, step=1, limit=6
  $region2: #{extended_filip_forward.3} parent=0 // loop_pre_header
    _
  $region3: #{extended_filip_forward.3} parent=0 // loop_header
    %s12 = sphi 0, %s16
    %p13 = scmp.ge.s32.totalorder %s12, 6
    %s19 = sphi 0, %s31
    %s20 = sphi 0, %s27
    %s21 = sphi 0, %s19
    %s22 = sphi 0, %s20
    %s23 = sphi 0, %s21
    %s24 = sphi 0, %s22
    %s34 = sphi 0, %s36
    %s37 = sphi 0, %s34
    %s38 = sphi 0, %s37
    %s54 = sphi 0, %s38
    %s60 = sphi 0, %s62
    %s63 = sphi 0, %s60
    %s64 = sphi 0, %s63
    %s80 = sphi 0, %s64
    %s86 = sphi 0, %s88
    %s89 = sphi 0, %s86
    %s90 = sphi 0, %s89
    %s106 = sphi 0, %s90
    %s112 = sphi 0, %s114
    %s115 = sphi 0, %s112
    %s116 = sphi 0, %s115
    %s132 = sphi 0, %s116
    %s140 = sphi 0, %s142
    %s143 = sphi 0, %s140
    %s144 = sphi 0, %s143
    %s160 = sphi 0, %s144
    %s168 = sphi 0, %s170
    %s171 = sphi 0, %s168
    %s172 = sphi 0, %s171
    %s188 = sphi 0, %s172
  $region4: #{extended_filip_forward.3} parent=0 // loop_header_branch
    %15 = sbr.rel (%p13) target = $region8
  $region5: #{extended_filip_forward.3} parent=0 // loop_body
    %s17 = ssub.s32 %s12, 1
    %s18 = ssub.s32 %s12, 2
    %s25 = sadd.s32 1, %s20
    %p26 = scmp.ge.s32.totalorder %s25, 2
    %s27 = scalar_select %p26, 0, %s25
    %s28 = sadd.s32 1, %s19
    %s29 = scalar_select %p26, %s28, %s19
    %p30 = scmp.ge.s32.totalorder %s29, 2
    %s31 = scalar_select %p30, 0, %s29
    %s32 = ssub.s32 %s19, %s31
    %p33 = scmp.eq.s32.totalorder %s32, 0
    %s35 = sadd.s32 %s34, 1
    %s36 = scalar_select %p33, %s34, %s35
    %p39 = pneg %p33
    %p40 = scmp.eq.s32.totalorder %s12, 3
    %p41 = por %p39, %p40
    %p42 = scmp.ne.s32.totalorder %s34, %s37
    %p43 = scmp.eq.s32.totalorder %s12, 0
    %p44 = por %p42, %p43
    %p45 = scmp.ne.s32.totalorder %s34, %s37
    %p46 = scmp.eq.s32.totalorder %s17, 3
    %p47 = por %p45, %p46
    %p48 = scmp.ne.s32.totalorder %s37, %s38
    %p49 = scmp.eq.s32.totalorder %s17, 0
    %p50 = por %p48, %p49
    %p51 = scmp.ne.s32.totalorder %s37, %s38
    %p52 = scmp.eq.s32.totalorder %s18, 3
    %p53 = por %p51, %p52
    %p55 = scmp.ne.s32.totalorder %s38, %s54
    %p56 = scmp.eq.s32.totalorder %s18, 0
    %p57 = por %p55, %p56
    %s58 = ssub.s32 %s20, %s27
    %p59 = scmp.eq.s32.totalorder %s58, 0
    %s61 = sadd.s32 %s60, 1
    %s62 = scalar_select %p59, %s60, %s61
    %p65 = pneg %p59
    %p66 = scmp.eq.s32.totalorder %s12, 3
    %p67 = por %p65, %p66
    %p68 = scmp.ne.s32.totalorder %s60, %s63
    %p69 = scmp.eq.s32.totalorder %s12, 0
    %p70 = por %p68, %p69
    %p71 = scmp.ne.s32.totalorder %s60, %s63
    %p72 = scmp.eq.s32.totalorder %s17, 3
    %p73 = por %p71, %p72
    %p74 = scmp.ne.s32.totalorder %s63, %s64
    %p75 = scmp.eq.s32.totalorder %s17, 0
    %p76 = por %p74, %p75
    %p77 = scmp.ne.s32.totalorder %s63, %s64
    %p78 = scmp.eq.s32.totalorder %s18, 3
    %p79 = por %p77, %p78
    %p81 = scmp.ne.s32.totalorder %s64, %s80
    %p82 = scmp.eq.s32.totalorder %s18, 0
    %p83 = por %p81, %p82
    %s84 = ssub.s32 %s19, %s31
    %p85 = scmp.eq.s32.totalorder %s84, 0
    %s87 = sadd.s32 %s86, 1
    %s88 = scalar_select %p85, %s86, %s87
    %p91 = pneg %p85
    %p92 = scmp.eq.s32.totalorder %s12, 3
    %p93 = por %p91, %p92
    %p94 = scmp.ne.s32.totalorder %s86, %s89
    %p95 = scmp.eq.s32.totalorder %s12, 0
    %p96 = por %p94, %p95
    %p97 = scmp.ne.s32.totalorder %s86, %s89
    %p98 = scmp.eq.s32.totalorder %s17, 3
    %p99 = por %p97, %p98
    %p100 = scmp.ne.s32.totalorder %s89, %s90
    %p101 = scmp.eq.s32.totalorder %s17, 0
    %p102 = por %p100, %p101
    %p103 = scmp.ne.s32.totalorder %s89, %s90
    %p104 = scmp.eq.s32.totalorder %s18, 3
    %p105 = por %p103, %p104
    %p107 = scmp.ne.s32.totalorder %s90, %s106
    %p108 = scmp.eq.s32.totalorder %s18, 0
    %p109 = por %p107, %p108
    %s110 = ssub.s32 %s20, %s27
    %p111 = scmp.eq.s32.totalorder %s110, 0
    %s113 = sadd.s32 %s112, 1
    %s114 = scalar_select %p111, %s112, %s113
    %p117 = pneg %p111
    %p118 = scmp.eq.s32.totalorder %s12, 3
    %p119 = por %p117, %p118
    %p120 = scmp.ne.s32.totalorder %s112, %s115
    %p121 = scmp.eq.s32.totalorder %s12, 0
    %p122 = por %p120, %p121
    %p123 = scmp.ne.s32.totalorder %s112, %s115
    %p124 = scmp.eq.s32.totalorder %s17, 3
    %p125 = por %p123, %p124
    %p126 = scmp.ne.s32.totalorder %s115, %s116
    %p127 = scmp.eq.s32.totalorder %s17, 0
    %p128 = por %p126, %p127
    %p129 = scmp.ne.s32.totalorder %s115, %s116
    %p130 = scmp.eq.s32.totalorder %s18, 3
    %p131 = por %p129, %p130
    %p133 = scmp.ne.s32.totalorder %s116, %s132
    %p134 = scmp.eq.s32.totalorder %s18, 0
    %p135 = por %p133, %p134
    %s136 = ssub.s32 %s19, %s31
    %s137 = ssub.s32 %s20, %s27
    %s138 = sor.u32 %s136, %s137
    %p139 = scmp.eq.s32.totalorder %s138, 0
    %s141 = sadd.s32 %s140, 1
    %s142 = scalar_select %p139, %s140, %s141
    %p145 = pneg %p139
    %p146 = scmp.eq.s32.totalorder %s12, 3
    %p147 = por %p145, %p146
    %p148 = scmp.ne.s32.totalorder %s140, %s143
    %p149 = scmp.eq.s32.totalorder %s12, 0
    %p150 = por %p148, %p149
    %p151 = scmp.ne.s32.totalorder %s140, %s143
    %p152 = scmp.eq.s32.totalorder %s17, 3
    %p153 = por %p151, %p152
    %p154 = scmp.ne.s32.totalorder %s143, %s144
    %p155 = scmp.eq.s32.totalorder %s17, 0
    %p156 = por %p154, %p155
    %p157 = scmp.ne.s32.totalorder %s143, %s144
    %p158 = scmp.eq.s32.totalorder %s18, 3
    %p159 = por %p157, %p158
    %p161 = scmp.ne.s32.totalorder %s144, %s160
    %p162 = scmp.eq.s32.totalorder %s18, 0
    %p163 = por %p161, %p162
    %s164 = ssub.s32 %s19, %s31
    %s165 = ssub.s32 %s20, %s27
    %s166 = sor.u32 %s164, %s165
    %p167 = scmp.eq.s32.totalorder %s166, 0
    %s169 = sadd.s32 %s168, 1
    %s170 = scalar_select %p167, %s168, %s169
    %p173 = pneg %p167
    %p174 = scmp.eq.s32.totalorder %s12, 3
    %p175 = por %p173, %p174
    %p176 = scmp.ne.s32.totalorder %s168, %s171
    %p177 = scmp.eq.s32.totalorder %s12, 0
    %p178 = por %p176, %p177
    %p179 = scmp.ne.s32.totalorder %s168, %s171
    %p180 = scmp.eq.s32.totalorder %s17, 3
    %p181 = por %p179, %p180
    %p182 = scmp.ne.s32.totalorder %s171, %s172
    %p183 = scmp.eq.s32.totalorder %s17, 0
    %p184 = por %p182, %p183
    %p185 = scmp.ne.s32.totalorder %s171, %s172
    %p186 = scmp.eq.s32.totalorder %s18, 3
    %p187 = por %p185, %p186
    %p189 = scmp.ne.s32.totalorder %s172, %s188
    %p190 = scmp.eq.s32.totalorder %s18, 0
    %p191 = por %p189, %p190
    %p192 = scmp.le.s32.totalorder 1, %s12
    %p193 = scmp.lt.s32.totalorder %s12, 5
    %p194 = pnand %p192, %p193
    %p195 = pneg %p194
    // Predicated region
    $region9: #{extended_filip_forward.3} parent=5 // pred_check
      _
    $region10: #{extended_filip_forward.3} parent=5 // pred_check_branch
      %197 = sbr.rel (%p194) target = $region12
    $region11: #{extended_filip_forward.3} parent=5 // pred_region
      %s198 = ssub.s32 %s12, 1
    $region12: #{extended_filip_forward.3} parent=5 // pred_fallthru
      _
    %p199 = scmp.lt.s32.totalorder %s12, 4
    // Predicated region
    $region13: #{extended_filip_forward.3} parent=5 // pred_check
      %p200 = pneg %p199
    $region14: #{extended_filip_forward.3} parent=5 // pred_check_branch
      %202 = sbr.rel (%p200) target = $region16
    $region15: #{extended_filip_forward.3} parent=5 // pred_region
      // Predicated region
      $region17: #{extended_filip_forward.3} parent=15 // pred_check
        %p203 = pneg %p44
      $region18: #{extended_filip_forward.3} parent=15 // pred_check_branch
        %205 = sbr.rel (%p203) target = $region20
      $region19: #{extended_filip_forward.3} parent=15 // pred_region
        %p206 = scmp.lt.s32.totalorder %s19, 1
        %s207 = scalar_select %p206, %s19, 1
        %s208 = smul.addr %s207, 4
        %s209 = scalar_lea.vmem %s0, %s208
      $region20: #{extended_filip_forward.3} parent=15 // pred_fallthru
        _
      // Predicated region
      $region21: #{extended_filip_forward.3} parent=15 // pred_check
        %p210 = pneg %p70
      $region22: #{extended_filip_forward.3} parent=15 // pred_check_branch
        %212 = sbr.rel (%p210) target = $region24
      $region23: #{extended_filip_forward.3} parent=15 // pred_region
        %p213 = scmp.lt.s32.totalorder %s20, 1
        %s214 = scalar_select %p213, %s20, 1
        %s215 = smul.addr %s214, 4
        %s216 = scalar_lea.vmem %s1, %s215
      $region24: #{extended_filip_forward.3} parent=15 // pred_fallthru
        _
      // Predicated region
      $region25: #{extended_filip_forward.3} parent=15 // pred_check
        %p217 = pneg %p96
      $region26: #{extended_filip_forward.3} parent=15 // pred_check_branch
        %219 = sbr.rel (%p217) target = $region28
      $region27: #{extended_filip_forward.3} parent=15 // pred_region
        %p220 = scmp.lt.s32.totalorder %s19, 1
        %s221 = scalar_select %p220, %s19, 1
        %s222 = smul.addr %s221, 8
        %s223 = scalar_lea.vmem %s2, %s222
      $region28: #{extended_filip_forward.3} parent=15 // pred_fallthru
        _
      // Predicated region
      $region29: #{extended_filip_forward.3} parent=15 // pred_check
        %p224 = pneg %p122
      $region30: #{extended_filip_forward.3} parent=15 // pred_check_branch
        %226 = sbr.rel (%p224) target = $region32
      $region31: #{extended_filip_forward.3} parent=15 // pred_region
        %p227 = scmp.lt.s32.totalorder %s20, 1
        %s228 = scalar_select %p227, %s20, 1
        %s229 = scalar_lea.vmem %s3, %s228
      $region32: #{extended_filip_forward.3} parent=15 // pred_fallthru
        _
    $region16: #{extended_filip_forward.3} parent=5 // pred_fallthru
      _
    %p230 = scmp.le.s32.totalorder 1, %s12
    %p231 = scmp.lt.s32.totalorder %s12, 5
    %p232 = pnand %p230, %p231
    %p233 = pneg %p232
    // Predicated region
    $region33: #{extended_filip_forward.3} parent=5 // pred_check
      _
    $region34: #{extended_filip_forward.3} parent=5 // pred_check_branch
      %235 = sbr.rel (%p232) target = $region36
    $region35: #{extended_filip_forward.3} parent=5 // pred_region
      %s236 = ssub.s32 %s12, 1
      %p237 = scmp.lt.s32.totalorder %s21, 1
      %s238 = scalar_select %p237, %s21, 1
      %s239 = smul.addr %s238, 4
      %s240 = scalar_lea.vmem %s0, %s239
      %p241 = pneg %p50
      %p242 = pneg %p47
      %p243 = scmp.lt.s32.totalorder %s22, 1
      %s244 = scalar_select %p243, %s22, 1
      %s245 = smul.addr %s244, 4
      %s246 = scalar_lea.vmem %s1, %s245
      %p247 = pneg %p76
      %p248 = pneg %p73
      %p249 = scmp.lt.s32.totalorder %s21, 1
      %s250 = scalar_select %p249, %s21, 1
      %s251 = smul.addr %s250, 8
      %s252 = scalar_lea.vmem %s2, %s251
      %p253 = pneg %p102
      %p254 = pneg %p99
      %p255 = scmp.lt.s32.totalorder %s22, 1
      %s256 = scalar_select %p255, %s22, 1
      %s257 = scalar_lea.vmem %s3, %s256
      %p258 = pneg %p128
      %p259 = pneg %p125
      %p260 = pneg %p156
      %p261 = pneg %p153
      %p262 = scmp.lt.s32.totalorder %s21, 1
      %s263 = scalar_select %p262, %s21, 1
      %p264 = scmp.lt.s32.totalorder %s22, 1
      %s265 = scalar_select %p264, %s22, 1
      %s266 = smul.addr %s263, 2
      %s267 = sadd.s32 %s265, %s266
      %s268 = scalar_lea.vmem %s4, %s267
      %p269 = pneg %p184
      %p270 = pneg %p181
      %p271 = scmp.lt.s32.totalorder %s21, 1
      %s272 = scalar_select %p271, %s21, 1
      %p273 = scmp.lt.s32.totalorder %s22, 1
      %s274 = scalar_select %p273, %s22, 1
      %s275 = smul.addr %s272, 2
      %s276 = sadd.s32 %s274, %s275
      %s277 = scalar_lea.vmem %s5, %s276
      %p278 = scmp.lt.s32.totalorder %s21, 1
      %s279 = scalar_select %p278, %s21, 1
      %s280 = smul.addr %s279, 4
      %s281 = scalar_lea.vmem %s0, %s280
      %p282 = scmp.lt.s32.totalorder %s22, 1
      %s283 = scalar_select %p282, %s22, 1
      %s284 = smul.addr %s283, 4
      %s285 = scalar_lea.vmem %s1, %s284
      %p286 = scmp.lt.s32.totalorder %s21, 1
      %s287 = scalar_select %p286, %s21, 1
      %s288 = smul.addr %s287, 8
      %s289 = scalar_lea.vmem %s2, %s288
      %p290 = scmp.lt.s32.totalorder %s22, 1
      %s291 = scalar_select %p290, %s22, 1
      %s292 = scalar_lea.vmem %s3, %s291
      %p293 = scmp.lt.s32.totalorder %s21, 1
      %s294 = scalar_select %p293, %s21, 1
      %p295 = scmp.lt.s32.totalorder %s22, 1
      %s296 = scalar_select %p295, %s22, 1
      %s297 = smul.addr %s294, 2
      %s298 = sadd.s32 %s296, %s297
      %s299 = scalar_lea.vmem %s4, %s298
      %p300 = scmp.lt.s32.totalorder %s21, 1
      %s301 = scalar_select %p300, %s21, 1
      %p302 = scmp.lt.s32.totalorder %s22, 1
      %s303 = scalar_select %p302, %s22, 1
      %s304 = smul.addr %s301, 2
      %s305 = sadd.s32 %s303, %s304
      %s306 = scalar_lea.vmem %s5, %s305
      %v308 = vld [vmem:[%s281] sm:$0xf]
      %v309 = vld [vmem:[%s285] sm:$0xf]
      %v310 = vld [vmem:[%s289] sm:$0xff]
      %v311 = vld [vmem:[%s292] sm:$0x1]
      %vm312 = vcmask 261120
      %v314 = vsel %vm312, %v308, 0
      %v317 = vsel %vm312, %v309, 0
      %319 = vmatprep.subr.bf16.mxu0 0
      %320 = vmatpush1.bf16.xpose.msra.mxu0 %v317
      %321 = vmatprep.subr.bf16.mxu0 0
      %322 = vmatpush1.bf16.xpose.msra.mxu0 0
      %323 = vmatprep.subr.bf16.mxu0 0
      %324 = vmatpush1.bf16.xpose.msra.mxu0 0
      %325 = vmatprep.subr.bf16.mxu0 0
      %326 = vmatpush1.bf16.xpose.msra.mxu0 0
      %327 = vmatprep.subr.bf16.mxu0 0
      %328 = vmatpush1.bf16.xpose.msra.mxu0 0
      %329 = vmatprep.subr.bf16.mxu0 0
      %330 = vmatpush1.bf16.xpose.msra.mxu0 0
      %331 = vmatprep.subr.bf16.mxu0 0
      %332 = vmatpush1.bf16.xpose.msra.mxu0 0
      %333 = vmatprep.subr.bf16.mxu0 0
      %334 = vmatpush1.bf16.xpose.msra.mxu0 0
      %335 = vmatprep.subr.bf16.mxu0 0
      %336 = vmatpush1.bf16.xpose.msra.mxu0 0
      %337 = vmatprep.subr.bf16.mxu0 0
      %338 = vmatpush1.bf16.xpose.msra.mxu0 0
      %339 = vmatprep.subr.bf16.mxu0 0
      %340 = vmatpush1.bf16.xpose.msra.mxu0 0
      %341 = vmatprep.subr.bf16.mxu0 0
      %342 = vmatpush1.bf16.xpose.msra.mxu0 0
      %343 = vmatprep.subr.bf16.mxu0 0
      %344 = vmatpush1.bf16.xpose.msra.mxu0 0
      %345 = vmatprep.subr.bf16.mxu0 0
      %346 = vmatpush1.bf16.xpose.msra.mxu0 0
      %347 = vmatprep.subr.bf16.mxu0 0
      %348 = vmatpush1.bf16.xpose.msra.mxu0 0
      %349 = vmatprep.subr.bf16.mxu0 0
      %350 = vmatpush1.bf16.xpose.msra.mxu0 0
      %351 = vmatprep.mubr.bf16.mxu0 0
      %352 = vmatmul.mubr.bf16.gmra.mrb[0].mxu0 %v314
      %v353 = vpop.f32.mrb[0].mxu0
      %v354 = vadd.f32 0.0, %v353
      %v355 = vpop.f32.mrb[0].mxu0
      %v356 = vpop.f32.mrb[0].mxu0
      %v357 = vpop.f32.mrb[0].mxu0
      %358 = vdwg.mxu0
      %vm359 = vcmp.gt.f32.partialorder %v311, 0.0
      %v360 = vsel %vm359, 1, 0
      %v361 = vlaneseq
      %v362 = vshrl.u32 %v361, 7
      %v363 = vsub.s32 0, %v362
      %v364 = vrot.slane %v360, %v363
      %vm365 = vcmp.eq.s32.totalorder %v364, 1
      %v366 = vsel %vm365, %v354, -3.4028235e+38
      %vm367 = vcmask 64512
      %v368 = vsel %vm367, %v366, -inf
      %369 = vmax.xlane.f32.xlu0 %v368
      %v370 = vpop.xlane.xlu0 %369
      %vm371 = vcmp.gt.f32.partialorder %v310, 0.0
      %v372 = vsel %vm371, %v370, 0.0
      %vm373 = vcmask 7168
      %v374 = vsel %vm373, %v372, 0.0
      %v375 = vrot.slane %v374, 4
      %v376 = vadd.f32 %v374, %v375
      %v377 = vrot.slane %v376, 2
      %v378 = vadd.f32 %v376, %v377
      %v379 = vrot.slane %v378, 1
      %v380 = vadd.f32 %v378, %v379
      %v381 = vsel %vm373, %v310, 0.0
      %v382 = vrot.slane %v381, 4
      %v383 = vadd.f32 %v381, %v382
      %v384 = vrot.slane %v383, 2
      %v385 = vadd.f32 %v383, %v384
      %v386 = vrot.slane %v385, 1
      %v387 = vadd.f32 %v385, %v386
      %v388 = vmax.f32 %v387, 1e-06
      %v389 = vrcp.pop %v388
      %v390 = vmul.f32 %v380, %v389
      %vm391 = vcmask 0
      %392 = vst.msk [vmem:[%s299] sm:$0x1] %vm391, %v390
      %v393 = vsel %vm371, 1, 0
      %394 = vset.pattern.permute.xlu0 0
      %395 = vperm.xlu0 %394, %v393
      %v396 = vpop.permute.xlu0 %395
      %vm397 = vcmp.eq.s32.totalorder %v396, 1
      %v398 = vsel %vm397, %v354, -3.4028235e+38
      %v399 = vsel %vm367, %v398, -inf
      %v400 = vrot.slane %v399, 4
      %v401 = vmax.f32 %v399, %v400
      %v402 = vrot.slane %v401, 2
      %v403 = vmax.f32 %v401, %v402
      %v404 = vrot.slane %v403, 1
      %v405 = vmax.f32 %v403, %v404
      %v406 = vsel %vm359, %v405, 0.0
      %vm407 = vcmask 57344
      %v408 = vsel %vm407, %v406, 0.0
      %409 = vadd.xlane.f32.xlu0 %v408
      %v410 = vpop.xlane.xlu0 %409
      %v411 = vsel %vm407, %v311, 0.0
      %412 = vadd.xlane.f32.xlu0 %v411
      %v413 = vpop.xlane.xlu0 %412
      %v414 = vmax.f32 %v413, 1e-06
      %v415 = vrcp.pop %v414
      %v416 = vmul.f32 %v410, %v415
      %417 = vst.msk [vmem:[%s306] sm:$0x1] %vm391, %v416
      %p418 = scmp.lt.s32.totalorder %s21, 1
      %s419 = scalar_select %p418, %s21, 1
      %p420 = scmp.lt.s32.totalorder %s22, 1
      %s421 = scalar_select %p420, %s22, 1
      %s422 = smul.addr %s419, 2
      %s423 = sadd.s32 %s421, %s422
      %s424 = scalar_lea.vmem %s4, %s423
      %p425 = scmp.lt.s32.totalorder %s21, 1
      %s426 = scalar_select %p425, %s21, 1
      %p427 = scmp.lt.s32.totalorder %s22, 1
      %s428 = scalar_select %p427, %s22, 1
      %s429 = smul.addr %s426, 2
      %s430 = sadd.s32 %s428, %s429
      %s431 = scalar_lea.vmem %s5, %s430
      // Predicated region
      $region37: #{extended_filip_forward.3} parent=35 // pred_check
        %p432 = pneg %p153
      $region38: #{extended_filip_forward.3} parent=35 // pred_check_branch
        %434 = sbr.rel (%p432) target = $region40
      $region39: #{extended_filip_forward.3} parent=35 // pred_region
        _
      $region40: #{extended_filip_forward.3} parent=35 // pred_fallthru
        _
      // Predicated region
      $region41: #{extended_filip_forward.3} parent=35 // pred_check
        %p435 = pneg %p181
      $region42: #{extended_filip_forward.3} parent=35 // pred_check_branch
        %437 = sbr.rel (%p435) target = $region44
      $region43: #{extended_filip_forward.3} parent=35 // pred_region
        _
      $region44: #{extended_filip_forward.3} parent=35 // pred_fallthru
        _
    $region36: #{extended_filip_forward.3} parent=5 // pred_fallthru
      _
    %p438 = scmp.le.s32.totalorder 2, %s12
    // Predicated region
    $region45: #{extended_filip_forward.3} parent=5 // pred_check
      %p439 = pneg %p438
    $region46: #{extended_filip_forward.3} parent=5 // pred_check_branch
      %441 = sbr.rel (%p439) target = $region48
    $region47: #{extended_filip_forward.3} parent=5 // pred_region
      %s442 = ssub.s32 %s12, 2
      // Predicated region
      $region49: #{extended_filip_forward.3} parent=47 // pred_check
        %p443 = pneg %p159
      $region50: #{extended_filip_forward.3} parent=47 // pred_check_branch
        %445 = sbr.rel (%p443) target = $region52
      $region51: #{extended_filip_forward.3} parent=47 // pred_region
        %p446 = scmp.lt.s32.totalorder %s23, 1
        %s447 = scalar_select %p446, %s23, 1
        %p448 = scmp.lt.s32.totalorder %s24, 1
        %s449 = scalar_select %p448, %s24, 1
        %s450 = smul.addr %s447, 2
        %s451 = sadd.s32 %s449, %s450
        %s452 = scalar_lea.vmem %s4, %s451
      $region52: #{extended_filip_forward.3} parent=47 // pred_fallthru
        _
      // Predicated region
      $region53: #{extended_filip_forward.3} parent=47 // pred_check
        %p453 = pneg %p187
      $region54: #{extended_filip_forward.3} parent=47 // pred_check_branch
        %455 = sbr.rel (%p453) target = $region56
      $region55: #{extended_filip_forward.3} parent=47 // pred_region
        %p456 = scmp.lt.s32.totalorder %s23, 1
        %s457 = scalar_select %p456, %s23, 1
        %p458 = scmp.lt.s32.totalorder %s24, 1
        %s459 = scalar_select %p458, %s24, 1
        %s460 = smul.addr %s457, 2
        %s461 = sadd.s32 %s459, %s460
        %s462 = scalar_lea.vmem %s5, %s461
      $region56: #{extended_filip_forward.3} parent=47 // pred_fallthru
        _
    $region48: #{extended_filip_forward.3} parent=5 // pred_fallthru
      _
  $region6: #{extended_filip_forward.3} parent=0 // loop_footer
    %s16 = sadd.s32 1, %s12
  $region7: #{extended_filip_forward.3} parent=0 // loop_footer_branch
    %11 = sbr.rel target = $region3
  $region8: #{extended_filip_forward.3} parent=0 // loop_exit
    _

// kernel: extended_filip_forward.2
$region0: #{extended_filip_forward.2}
  #allocation0 [shape = 'u32[]', space=smem, size = 0x4, offset = 0x4, fixed_abs, tag = 'smem constant byte address 0x4 - core index']
  #allocation1 [shape = 'u32[144,128]{1,0:T(1,128)}', space=vmem, size = 0x12000, scoped, tag = 'internal scratch']
  %s0 = inlined_call_operand.vmem [shape: bf16[2,16,32], index: 0, kind: input, shape index: {}]
  %s1 = inlined_call_operand.vmem [shape: f32[2,1,1], index: 1, kind: input, shape index: {}]
  %s2 = inlined_call_operand.vmem [shape: bf16[2,32,32], index: 2, kind: input, shape index: {}]
  %s3 = inlined_call_operand.vmem [shape: f32[2,1,32], index: 3, kind: input, shape index: {}]
  %s4 = inlined_call_operand.vmem [shape: bf16[2,32,32], index: 4, kind: input, shape index: {}]
  %s5 = inlined_call_operand.vmem [shape: f32[2,1,32], index: 5, kind: input, shape index: {}]
  %s6 = inlined_call_operand.vmem [shape: f32[2,1,32], index: 6, kind: input, shape index: {}]
  %s7 = inlined_call_operand.vmem [shape: f32[2,1,32], index: 7, kind: input, shape index: {}]
  %s8 = inlined_call_operand.vmem [shape: bf16[2,32,32], index: 8, kind: input, shape index: {}]
  %s9 = inlined_call_operand.vmem [shape: f32[2,1,32], index: 9, kind: input, shape index: {}]
  %s10 = inlined_call_operand.vmem [shape: bf16[2,16,32], index: 10, kind: output, shape index: {}]
  %s11 = sld [smem:[#allocation0]]
  $region73: #{extended_filip_forward.2} parent=0
    _
  %s13 = ssub.s32 1, %s11
  %s14 = scalar_select 0, %s13, %s11
  loop: start=0, step=1, limit=4
  $region2: #{extended_filip_forward.2} parent=0 // loop_pre_header
    _
  $region3: #{extended_filip_forward.2} parent=0 // loop_header
    %s16 = sphi 0, %s20
    %p17 = scmp.ge.s32.totalorder %s16, 4
    %s23 = sphi 0, %s35
    %s24 = sphi 0, %s31
    %s25 = sphi 0, %s23
    %s26 = sphi 0, %s24
    %s27 = sphi 0, %s25
    %s28 = sphi 0, %s26
    %s40 = sphi 0, %s42
    %s43 = sphi 0, %s40
    %s44 = sphi 0, %s43
    %s60 = sphi 0, %s44
    %s66 = sphi 0, %s68
    %s69 = sphi 0, %s66
    %s70 = sphi 0, %s69
    %s86 = sphi 0, %s70
    %s92 = sphi 0, %s94
    %s95 = sphi 0, %s92
    %s96 = sphi 0, %s95
    %s112 = sphi 0, %s96
    %s118 = sphi 0, %s120
    %s121 = sphi 0, %s118
    %s122 = sphi 0, %s121
    %s138 = sphi 0, %s122
    %s144 = sphi 0, %s146
    %s147 = sphi 0, %s144
    %s148 = sphi 0, %s147
    %s164 = sphi 0, %s148
    %s170 = sphi 0, %s172
    %s173 = sphi 0, %s170
    %s174 = sphi 0, %s173
    %s190 = sphi 0, %s174
    %s196 = sphi 0, %s198
    %s199 = sphi 0, %s196
    %s200 = sphi 0, %s199
    %s216 = sphi 0, %s200
    %s222 = sphi 0, %s224
    %s225 = sphi 0, %s222
    %s226 = sphi 0, %s225
    %s242 = sphi 0, %s226
    %s248 = sphi 0, %s250
    %s251 = sphi 0, %s248
    %s252 = sphi 0, %s251
    %s268 = sphi 0, %s252
    %s274 = sphi 0, %s276
    %s277 = sphi 0, %s274
    %s278 = sphi 0, %s277
    %s294 = sphi 0, %s278
    %s302 = sphi 0, %s304
    %s305 = sphi 0, %s302
    %s306 = sphi 0, %s305
    %s322 = sphi 0, %s306
  $region4: #{extended_filip_forward.2} parent=0 // loop_header_branch
    %19 = sbr.rel (%p17) target = $region8
  $region5: #{extended_filip_forward.2} parent=0 // loop_body
    %s21 = ssub.s32 %s16, 1
    %s22 = ssub.s32 %s16, 2
    %s29 = sadd.s32 1, %s24
    %p30 = scmp.ge.s32.totalorder %s29, 1
    %s31 = scalar_select %p30, 0, %s29
    %s32 = sadd.s32 1, %s23
    %s33 = scalar_select %p30, %s32, %s23
    %p34 = scmp.ge.s32.totalorder %s33, 2
    %s35 = scalar_select %p34, 0, %s33
    %s36 = ssub.s32 %s23, %s35
    %s37 = ssub.s32 %s24, %s31
    %s38 = sor.u32 %s36, %s37
    %p39 = scmp.eq.s32.totalorder %s38, 0
    %s41 = sadd.s32 %s40, 1
    %s42 = scalar_select %p39, %s40, %s41
    %p45 = pneg %p39
    %p46 = scmp.eq.s32.totalorder %s16, 1
    %p47 = por %p45, %p46
    %p48 = scmp.ne.s32.totalorder %s40, %s43
    %p49 = scmp.eq.s32.totalorder %s16, 0
    %p50 = por %p48, %p49
    %p51 = scmp.ne.s32.totalorder %s40, %s43
    %p52 = scmp.eq.s32.totalorder %s21, 1
    %p53 = por %p51, %p52
    %p54 = scmp.ne.s32.totalorder %s43, %s44
    %p55 = scmp.eq.s32.totalorder %s21, 0
    %p56 = por %p54, %p55
    %p57 = scmp.ne.s32.totalorder %s43, %s44
    %p58 = scmp.eq.s32.totalorder %s22, 1
    %p59 = por %p57, %p58
    %p61 = scmp.ne.s32.totalorder %s44, %s60
    %p62 = scmp.eq.s32.totalorder %s22, 0
    %p63 = por %p61, %p62
    %s64 = ssub.s32 %s23, %s35
    %p65 = scmp.eq.s32.totalorder %s64, 0
    %s67 = sadd.s32 %s66, 1
    %s68 = scalar_select %p65, %s66, %s67
    %p71 = pneg %p65
    %p72 = scmp.eq.s32.totalorder %s16, 1
    %p73 = por %p71, %p72
    %p74 = scmp.ne.s32.totalorder %s66, %s69
    %p75 = scmp.eq.s32.totalorder %s16, 0
    %p76 = por %p74, %p75
    %p77 = scmp.ne.s32.totalorder %s66, %s69
    %p78 = scmp.eq.s32.totalorder %s21, 1
    %p79 = por %p77, %p78
    %p80 = scmp.ne.s32.totalorder %s69, %s70
    %p81 = scmp.eq.s32.totalorder %s21, 0
    %p82 = por %p80, %p81
    %p83 = scmp.ne.s32.totalorder %s69, %s70
    %p84 = scmp.eq.s32.totalorder %s22, 1
    %p85 = por %p83, %p84
    %p87 = scmp.ne.s32.totalorder %s70, %s86
    %p88 = scmp.eq.s32.totalorder %s22, 0
    %p89 = por %p87, %p88
    %s90 = ssub.s32 %s23, %s35
    %p91 = scmp.eq.s32.totalorder %s90, 0
    %s93 = sadd.s32 %s92, 1
    %s94 = scalar_select %p91, %s92, %s93
    %p97 = pneg %p91
    %p98 = scmp.eq.s32.totalorder %s16, 1
    %p99 = por %p97, %p98
    %p100 = scmp.ne.s32.totalorder %s92, %s95
    %p101 = scmp.eq.s32.totalorder %s16, 0
    %p102 = por %p100, %p101
    %p103 = scmp.ne.s32.totalorder %s92, %s95
    %p104 = scmp.eq.s32.totalorder %s21, 1
    %p105 = por %p103, %p104
    %p106 = scmp.ne.s32.totalorder %s95, %s96
    %p107 = scmp.eq.s32.totalorder %s21, 0
    %p108 = por %p106, %p107
    %p109 = scmp.ne.s32.totalorder %s95, %s96
    %p110 = scmp.eq.s32.totalorder %s22, 1
    %p111 = por %p109, %p110
    %p113 = scmp.ne.s32.totalorder %s96, %s112
    %p114 = scmp.eq.s32.totalorder %s22, 0
    %p115 = por %p113, %p114
    %s116 = ssub.s32 %s23, %s35
    %p117 = scmp.eq.s32.totalorder %s116, 0
    %s119 = sadd.s32 %s118, 1
    %s120 = scalar_select %p117, %s118, %s119
    %p123 = pneg %p117
    %p124 = scmp.eq.s32.totalorder %s16, 1
    %p125 = por %p123, %p124
    %p126 = scmp.ne.s32.totalorder %s118, %s121
    %p127 = scmp.eq.s32.totalorder %s16, 0
    %p128 = por %p126, %p127
    %p129 = scmp.ne.s32.totalorder %s118, %s121
    %p130 = scmp.eq.s32.totalorder %s21, 1
    %p131 = por %p129, %p130
    %p132 = scmp.ne.s32.totalorder %s121, %s122
    %p133 = scmp.eq.s32.totalorder %s21, 0
    %p134 = por %p132, %p133
    %p135 = scmp.ne.s32.totalorder %s121, %s122
    %p136 = scmp.eq.s32.totalorder %s22, 1
    %p137 = por %p135, %p136
    %p139 = scmp.ne.s32.totalorder %s122, %s138
    %p140 = scmp.eq.s32.totalorder %s22, 0
    %p141 = por %p139, %p140
    %s142 = ssub.s32 %s23, %s35
    %p143 = scmp.eq.s32.totalorder %s142, 0
    %s145 = sadd.s32 %s144, 1
    %s146 = scalar_select %p143, %s144, %s145
    %p149 = pneg %p143
    %p150 = scmp.eq.s32.totalorder %s16, 1
    %p151 = por %p149, %p150
    %p152 = scmp.ne.s32.totalorder %s144, %s147
    %p153 = scmp.eq.s32.totalorder %s16, 0
    %p154 = por %p152, %p153
    %p155 = scmp.ne.s32.totalorder %s144, %s147
    %p156 = scmp.eq.s32.totalorder %s21, 1
    %p157 = por %p155, %p156
    %p158 = scmp.ne.s32.totalorder %s147, %s148
    %p159 = scmp.eq.s32.totalorder %s21, 0
    %p160 = por %p158, %p159
    %p161 = scmp.ne.s32.totalorder %s147, %s148
    %p162 = scmp.eq.s32.totalorder %s22, 1
    %p163 = por %p161, %p162
    %p165 = scmp.ne.s32.totalorder %s148, %s164
    %p166 = scmp.eq.s32.totalorder %s22, 0
    %p167 = por %p165, %p166
    %s168 = ssub.s32 %s23, %s35
    %p169 = scmp.eq.s32.totalorder %s168, 0
    %s171 = sadd.s32 %s170, 1
    %s172 = scalar_select %p169, %s170, %s171
    %p175 = pneg %p169
    %p176 = scmp.eq.s32.totalorder %s16, 1
    %p177 = por %p175, %p176
    %p178 = scmp.ne.s32.totalorder %s170, %s173
    %p179 = scmp.eq.s32.totalorder %s16, 0
    %p180 = por %p178, %p179
    %p181 = scmp.ne.s32.totalorder %s170, %s173
    %p182 = scmp.eq.s32.totalorder %s21, 1
    %p183 = por %p181, %p182
    %p184 = scmp.ne.s32.totalorder %s173, %s174
    %p185 = scmp.eq.s32.totalorder %s21, 0
    %p186 = por %p184, %p185
    %p187 = scmp.ne.s32.totalorder %s173, %s174
    %p188 = scmp.eq.s32.totalorder %s22, 1
    %p189 = por %p187, %p188
    %p191 = scmp.ne.s32.totalorder %s174, %s190
    %p192 = scmp.eq.s32.totalorder %s22, 0
    %p193 = por %p191, %p192
    %s194 = ssub.s32 %s23, %s35
    %p195 = scmp.eq.s32.totalorder %s194, 0
    %s197 = sadd.s32 %s196, 1
    %s198 = scalar_select %p195, %s196, %s197
    %p201 = pneg %p195
    %p202 = scmp.eq.s32.totalorder %s16, 1
    %p203 = por %p201, %p202
    %p204 = scmp.ne.s32.totalorder %s196, %s199
    %p205 = scmp.eq.s32.totalorder %s16, 0
    %p206 = por %p204, %p205
    %p207 = scmp.ne.s32.totalorder %s196, %s199
    %p208 = scmp.eq.s32.totalorder %s21, 1
    %p209 = por %p207, %p208
    %p210 = scmp.ne.s32.totalorder %s199, %s200
    %p211 = scmp.eq.s32.totalorder %s21, 0
    %p212 = por %p210, %p211
    %p213 = scmp.ne.s32.totalorder %s199, %s200
    %p214 = scmp.eq.s32.totalorder %s22, 1
    %p215 = por %p213, %p214
    %p217 = scmp.ne.s32.totalorder %s200, %s216
    %p218 = scmp.eq.s32.totalorder %s22, 0
    %p219 = por %p217, %p218
    %s220 = ssub.s32 %s23, %s35
    %p221 = scmp.eq.s32.totalorder %s220, 0
    %s223 = sadd.s32 %s222, 1
    %s224 = scalar_select %p221, %s222, %s223
    %p227 = pneg %p221
    %p228 = scmp.eq.s32.totalorder %s16, 1
    %p229 = por %p227, %p228
    %p230 = scmp.ne.s32.totalorder %s222, %s225
    %p231 = scmp.eq.s32.totalorder %s16, 0
    %p232 = por %p230, %p231
    %p233 = scmp.ne.s32.totalorder %s222, %s225
    %p234 = scmp.eq.s32.totalorder %s21, 1
    %p235 = por %p233, %p234
    %p236 = scmp.ne.s32.totalorder %s225, %s226
    %p237 = scmp.eq.s32.totalorder %s21, 0
    %p238 = por %p236, %p237
    %p239 = scmp.ne.s32.totalorder %s225, %s226
    %p240 = scmp.eq.s32.totalorder %s22, 1
    %p241 = por %p239, %p240
    %p243 = scmp.ne.s32.totalorder %s226, %s242
    %p244 = scmp.eq.s32.totalorder %s22, 0
    %p245 = por %p243, %p244
    %s246 = ssub.s32 %s23, %s35
    %p247 = scmp.eq.s32.totalorder %s246, 0
    %s249 = sadd.s32 %s248, 1
    %s250 = scalar_select %p247, %s248, %s249
    %p253 = pneg %p247
    %p254 = scmp.eq.s32.totalorder %s16, 1
    %p255 = por %p253, %p254
    %p256 = scmp.ne.s32.totalorder %s248, %s251
    %p257 = scmp.eq.s32.totalorder %s16, 0
    %p258 = por %p256, %p257
    %p259 = scmp.ne.s32.totalorder %s248, %s251
    %p260 = scmp.eq.s32.totalorder %s21, 1
    %p261 = por %p259, %p260
    %p262 = scmp.ne.s32.totalorder %s251, %s252
    %p263 = scmp.eq.s32.totalorder %s21, 0
    %p264 = por %p262, %p263
    %p265 = scmp.ne.s32.totalorder %s251, %s252
    %p266 = scmp.eq.s32.totalorder %s22, 1
    %p267 = por %p265, %p266
    %p269 = scmp.ne.s32.totalorder %s252, %s268
    %p270 = scmp.eq.s32.totalorder %s22, 0
    %p271 = por %p269, %p270
    %s272 = ssub.s32 %s23, %s35
    %p273 = scmp.eq.s32.totalorder %s272, 0
    %s275 = sadd.s32 %s274, 1
    %s276 = scalar_select %p273, %s274, %s275
    %p279 = pneg %p273
    %p280 = scmp.eq.s32.totalorder %s16, 1
    %p281 = por %p279, %p280
    %p282 = scmp.ne.s32.totalorder %s274, %s277
    %p283 = scmp.eq.s32.totalorder %s16, 0
    %p284 = por %p282, %p283
    %p285 = scmp.ne.s32.totalorder %s274, %s277
    %p286 = scmp.eq.s32.totalorder %s21, 1
    %p287 = por %p285, %p286
    %p288 = scmp.ne.s32.totalorder %s277, %s278
    %p289 = scmp.eq.s32.totalorder %s21, 0
    %p290 = por %p288, %p289
    %p291 = scmp.ne.s32.totalorder %s277, %s278
    %p292 = scmp.eq.s32.totalorder %s22, 1
    %p293 = por %p291, %p292
    %p295 = scmp.ne.s32.totalorder %s278, %s294
    %p296 = scmp.eq.s32.totalorder %s22, 0
    %p297 = por %p295, %p296
    %s298 = ssub.s32 %s23, %s35
    %s299 = ssub.s32 %s24, %s31
    %s300 = sor.u32 %s298, %s299
    %p301 = scmp.eq.s32.totalorder %s300, 0
    %s303 = sadd.s32 %s302, 1
    %s304 = scalar_select %p301, %s302, %s303
    %p307 = pneg %p301
    %p308 = scmp.eq.s32.totalorder %s16, 1
    %p309 = por %p307, %p308
    %p310 = scmp.ne.s32.totalorder %s302, %s305
    %p311 = scmp.eq.s32.totalorder %s16, 0
    %p312 = por %p310, %p311
    %p313 = scmp.ne.s32.totalorder %s302, %s305
    %p314 = scmp.eq.s32.totalorder %s21, 1
    %p315 = por %p313, %p314
    %p316 = scmp.ne.s32.totalorder %s305, %s306
    %p317 = scmp.eq.s32.totalorder %s21, 0
    %p318 = por %p316, %p317
    %p319 = scmp.ne.s32.totalorder %s305, %s306
    %p320 = scmp.eq.s32.totalorder %s22, 1
    %p321 = por %p319, %p320
    %p323 = scmp.ne.s32.totalorder %s306, %s322
    %p324 = scmp.eq.s32.totalorder %s22, 0
    %p325 = por %p323, %p324
    %p326 = scmp.le.s32.totalorder 1, %s16
    %p327 = scmp.lt.s32.totalorder %s16, 3
    %p328 = pnand %p326, %p327
    %p329 = pneg %p328
    // Predicated region
    $region9: #{extended_filip_forward.2} parent=5 // pred_check
      _
    $region10: #{extended_filip_forward.2} parent=5 // pred_check_branch
      %331 = sbr.rel (%p328) target = $region12
    $region11: #{extended_filip_forward.2} parent=5 // pred_region
      %s332 = ssub.s32 %s16, 1
    $region12: #{extended_filip_forward.2} parent=5 // pred_fallthru
      _
    %p333 = scmp.lt.s32.totalorder %s16, 2
    // Predicated region
    $region13: #{extended_filip_forward.2} parent=5 // pred_check
      %p334 = pneg %p333
    $region14: #{extended_filip_forward.2} parent=5 // pred_check_branch
      %336 = sbr.rel (%p334) target = $region16
    $region15: #{extended_filip_forward.2} parent=5 // pred_region
      // Predicated region
      $region17: #{extended_filip_forward.2} parent=15 // pred_check
        %p337 = pneg %p50
      $region18: #{extended_filip_forward.2} parent=15 // pred_check_branch
        %339 = sbr.rel (%p337) target = $region20
      $region19: #{extended_filip_forward.2} parent=15 // pred_region
        %s340 = smul.u32 2, %s24
        %p341 = scmp.lt.s32.totalorder %s23, 1
        %s342 = scalar_select %p341, %s23, 1
        %p343 = scmp.lt.s32.totalorder %s340, 1
        %s344 = scalar_select %p343, %s340, 1
        %s345 = smul.addr %s342, 2
        %s346 = sadd.s32 %s344, %s345
        %s347 = smul.addr %s346, 4
        %s348 = scalar_lea.vmem %s0, %s347
        %s349 = smul.u32 2, %s24
      $region20: #{extended_filip_forward.2} parent=15 // pred_fallthru
        _
      // Predicated region
      $region21: #{extended_filip_forward.2} parent=15 // pred_check
        %p350 = pneg %p76
      $region22: #{extended_filip_forward.2} parent=15 // pred_check_branch
        %352 = sbr.rel (%p350) target = $region24
      $region23: #{extended_filip_forward.2} parent=15 // pred_region
        %p353 = scmp.lt.s32.totalorder %s23, 1
        %s354 = scalar_select %p353, %s23, 1
        %s355 = scalar_lea.vmem %s1, %s354
      $region24: #{extended_filip_forward.2} parent=15 // pred_fallthru
        _
      // Predicated region
      $region25: #{extended_filip_forward.2} parent=15 // pred_check
        %p356 = pneg %p102
      $region26: #{extended_filip_forward.2} parent=15 // pred_check_branch
        %358 = sbr.rel (%p356) target = $region28
      $region27: #{extended_filip_forward.2} parent=15 // pred_region
        %p359 = scmp.lt.s32.totalorder %s23, 1
        %s360 = scalar_select %p359, %s23, 1
        %s361 = smul.addr %s360, 4
        %s362 = smul.addr %s361, 4
        %s363 = scalar_lea.vmem %s2, %s362
      $region28: #{extended_filip_forward.2} parent=15 // pred_fallthru
        _
      // Predicated region
      $region29: #{extended_filip_forward.2} parent=15 // pred_check
        %p364 = pneg %p128
      $region30: #{extended_filip_forward.2} parent=15 // pred_check_branch
        %366 = sbr.rel (%p364) target = $region32
      $region31: #{extended_filip_forward.2} parent=15 // pred_region
        %p367 = scmp.lt.s32.totalorder %s23, 1
        %s368 = scalar_select %p367, %s23, 1
        %s369 = scalar_lea.vmem %s3, %s368
      $region32: #{extended_filip_forward.2} parent=15 // pred_fallthru
        _
      // Predicated region
      $region33: #{extended_filip_forward.2} parent=15 // pred_check
        %p370 = pneg %p154
      $region34: #{extended_filip_forward.2} parent=15 // pred_check_branch
        %372 = sbr.rel (%p370) target = $region36
      $region35: #{extended_filip_forward.2} parent=15 // pred_region
        %p373 = scmp.lt.s32.totalorder %s23, 1
        %s374 = scalar_select %p373, %s23, 1
        %s375 = smul.addr %s374, 4
        %s376 = smul.addr %s375, 4
        %s377 = scalar_lea.vmem %s4, %s376
      $region36: #{extended_filip_forward.2} parent=15 // pred_fallthru
        _
      // Predicated region
      $region37: #{extended_filip_forward.2} parent=15 // pred_check
        %p378 = pneg %p180
      $region38: #{extended_filip_forward.2} parent=15 // pred_check_branch
        %380 = sbr.rel (%p378) target = $region40
      $region39: #{extended_filip_forward.2} parent=15 // pred_region
        %p381 = scmp.lt.s32.totalorder %s23, 1
        %s382 = scalar_select %p381, %s23, 1
        %s383 = scalar_lea.vmem %s5, %s382
      $region40: #{extended_filip_forward.2} parent=15 // pred_fallthru
        _
      // Predicated region
      $region41: #{extended_filip_forward.2} parent=15 // pred_check
        %p384 = pneg %p206
      $region42: #{extended_filip_forward.2} parent=15 // pred_check_branch
        %386 = sbr.rel (%p384) target = $region44
      $region43: #{extended_filip_forward.2} parent=15 // pred_region
        %p387 = scmp.lt.s32.totalorder %s23, 1
        %s388 = scalar_select %p387, %s23, 1
        %s389 = scalar_lea.vmem %s6, %s388
      $region44: #{extended_filip_forward.2} parent=15 // pred_fallthru
        _
      // Predicated region
      $region45: #{extended_filip_forward.2} parent=15 // pred_check
        %p390 = pneg %p232
      $region46: #{extended_filip_forward.2} parent=15 // pred_check_branch
        %392 = sbr.rel (%p390) target = $region48
      $region47: #{extended_filip_forward.2} parent=15 // pred_region
        %p393 = scmp.lt.s32.totalorder %s23, 1
        %s394 = scalar_select %p393, %s23, 1
        %s395 = scalar_lea.vmem %s7, %s394
      $region48: #{extended_filip_forward.2} parent=15 // pred_fallthru
        _
      // Predicated region
      $region49: #{extended_filip_forward.2} parent=15 // pred_check
        %p396 = pneg %p258
      $region50: #{extended_filip_forward.2} parent=15 // pred_check_branch
        %398 = sbr.rel (%p396) target = $region52
      $region51: #{extended_filip_forward.2} parent=15 // pred_region
        %p399 = scmp.lt.s32.totalorder %s23, 1
        %s400 = scalar_select %p399, %s23, 1
        %s401 = smul.addr %s400, 4
        %s402 = smul.addr %s401, 4
        %s403 = scalar_lea.vmem %s8, %s402
      $region52: #{extended_filip_forward.2} parent=15 // pred_fallthru
        _
      // Predicated region
      $region53: #{extended_filip_forward.2} parent=15 // pred_check
        %p404 = pneg %p284
      $region54: #{extended_filip_forward.2} parent=15 // pred_check_branch
        %406 = sbr.rel (%p404) target = $region56
      $region55: #{extended_filip_forward.2} parent=15 // pred_region
        %p407 = scmp.lt.s32.totalorder %s23, 1
        %s408 = scalar_select %p407, %s23, 1
        %s409 = scalar_lea.vmem %s9, %s408
      $region56: #{extended_filip_forward.2} parent=15 // pred_fallthru
        _
    $region16: #{extended_filip_forward.2} parent=5 // pred_fallthru
      _
    %p410 = scmp.le.s32.totalorder 1, %s16
    %p411 = scmp.lt.s32.totalorder %s16, 3
    %p412 = pnand %p410, %p411
    %p413 = pneg %p412
    // Predicated region
    $region57: #{extended_filip_forward.2} parent=5 // pred_check
      _
    $region58: #{extended_filip_forward.2} parent=5 // pred_check_branch
      %415 = sbr.rel (%p412) target = $region60
    $region59: #{extended_filip_forward.2} parent=5 // pred_region
      %s416 = ssub.s32 %s16, 1
      %s417 = smul.u32 2, %s26
      %p418 = scmp.lt.s32.totalorder %s25, 1
      %s419 = scalar_select %p418, %s25, 1
      %p420 = scmp.lt.s32.totalorder %s417, 1
      %s421 = scalar_select %p420, %s417, 1
      %s422 = smul.addr %s419, 2
      %s423 = sadd.s32 %s421, %s422
      %s424 = smul.addr %s423, 4
      %s425 = scalar_lea.vmem %s0, %s424
      %p426 = pneg %p56
      %p427 = pneg %p53
      %p428 = scmp.lt.s32.totalorder %s25, 1
      %s429 = scalar_select %p428, %s25, 1
      %s430 = scalar_lea.vmem %s1, %s429
      %p431 = pneg %p82
      %p432 = pneg %p79
      %p433 = scmp.lt.s32.totalorder %s25, 1
      %s434 = scalar_select %p433, %s25, 1
      %s435 = smul.addr %s434, 4
      %s436 = smul.addr %s435, 4
      %s437 = scalar_lea.vmem %s2, %s436
      %p438 = pneg %p108
      %p439 = pneg %p105
      %p440 = scmp.lt.s32.totalorder %s25, 1
      %s441 = scalar_select %p440, %s25, 1
      %s442 = scalar_lea.vmem %s3, %s441
      %p443 = pneg %p134
      %p444 = pneg %p131
      %p445 = scmp.lt.s32.totalorder %s25, 1
      %s446 = scalar_select %p445, %s25, 1
      %s447 = smul.addr %s446, 4
      %s448 = smul.addr %s447, 4
      %s449 = scalar_lea.vmem %s4, %s448
      %p450 = pneg %p160
      %p451 = pneg %p157
      %p452 = scmp.lt.s32.totalorder %s25, 1
      %s453 = scalar_select %p452, %s25, 1
      %s454 = scalar_lea.vmem %s5, %s453
      %p455 = pneg %p186
      %p456 = pneg %p183
      %p457 = scmp.lt.s32.totalorder %s25, 1
      %s458 = scalar_select %p457, %s25, 1
      %s459 = scalar_lea.vmem %s6, %s458
      %p460 = pneg %p212
      %p461 = pneg %p209
      %p462 = scmp.lt.s32.totalorder %s25, 1
      %s463 = scalar_select %p462, %s25, 1
      %s464 = scalar_lea.vmem %s7, %s463
      %p465 = pneg %p238
      %p466 = pneg %p235
      %p467 = scmp.lt.s32.totalorder %s25, 1
      %s468 = scalar_select %p467, %s25, 1
      %s469 = smul.addr %s468, 4
      %s470 = smul.addr %s469, 4
      %s471 = scalar_lea.vmem %s8, %s470
      %p472 = pneg %p264
      %p473 = pneg %p261
      %p474 = scmp.lt.s32.totalorder %s25, 1
      %s475 = scalar_select %p474, %s25, 1
      %s476 = scalar_lea.vmem %s9, %s475
      %p477 = pneg %p290
      %p478 = pneg %p287
      %p479 = pneg %p318
      %p480 = pneg %p315
      %s481 = smul.u32 2, %s26
      %p482 = scmp.lt.s32.totalorder %s25, 1
      %s483 = scalar_select %p482, %s25, 1
      %p484 = scmp.lt.s32.totalorder %s481, 1
      %s485 = scalar_select %p484, %s481, 1
      %s486 = smul.addr %s483, 2
      %s487 = sadd.s32 %s485, %s486
      %s488 = smul.addr %s487, 4
      %s489 = scalar_lea.vmem %s10, %s488
      %s490 = smul.u32 2, %s26
      %p491 = scmp.lt.s32.totalorder %s25, 1
      %s492 = scalar_select %p491, %s25, 1
      %p493 = scmp.lt.s32.totalorder %s490, 1
      %s494 = scalar_select %p493, %s490, 1
      %s495 = smul.addr %s492, 2
      %s496 = sadd.s32 %s494, %s495
      %s497 = smul.addr %s496, 4
      %s498 = scalar_lea.vmem %s0, %s497
      %s499 = smul.u32 2, %s26
      %p500 = scmp.lt.s32.totalorder %s25, 1
      %s501 = scalar_select %p500, %s25, 1
      %s502 = scalar_lea.vmem %s1, %s501
      %p503 = scmp.lt.s32.totalorder %s25, 1
      %s504 = scalar_select %p503, %s25, 1
      %s505 = smul.addr %s504, 4
      %s506 = smul.addr %s505, 4
      %s507 = scalar_lea.vmem %s2, %s506
      %p508 = scmp.lt.s32.totalorder %s25, 1
      %s509 = scalar_select %p508, %s25, 1
      %s510 = scalar_lea.vmem %s3, %s509
      %p511 = scmp.lt.s32.totalorder %s25, 1
      %s512 = scalar_select %p511, %s25, 1
      %s513 = smul.addr %s512, 4
      %s514 = smul.addr %s513, 4
      %s515 = scalar_lea.vmem %s4, %s514
      %p516 = scmp.lt.s32.totalorder %s25, 1
      %s517 = scalar_select %p516, %s25, 1
      %s518 = scalar_lea.vmem %s5, %s517
      %p519 = scmp.lt.s32.totalorder %s25, 1
      %s520 = scalar_select %p519, %s25, 1
      %s521 = scalar_lea.vmem %s6, %s520
      %p522 = scmp.lt.s32.totalorder %s25, 1
      %s523 = scalar_select %p522, %s25, 1
      %s524 = scalar_lea.vmem %s7, %s523
      %p525 = scmp.lt.s32.totalorder %s25, 1
      %s526 = scalar_select %p525, %s25, 1
      %s527 = smul.addr %s526, 4
      %s528 = smul.addr %s527, 4
      %s529 = scalar_lea.vmem %s8, %s528
      %p530 = scmp.lt.s32.totalorder %s25, 1
      %s531 = scalar_select %p530, %s25, 1
      %s532 = scalar_lea.vmem %s9, %s531
      %s533 = smul.u32 2, %s26
      %p534 = scmp.lt.s32.totalorder %s25, 1
      %s535 = scalar_select %p534, %s25, 1
      %p536 = scmp.lt.s32.totalorder %s533, 1
      %s537 = scalar_select %p536, %s533, 1
      %s538 = smul.addr %s535, 2
      %s539 = sadd.s32 %s537, %s538
      %s540 = smul.addr %s539, 4
      %s541 = scalar_lea.vmem %s10, %s540
      %s542 = smul.u32 2, %s26
      %v544 = vld [vmem:[%s498] sm:$0xf]
      %v545 = vld [vmem:[%s498 + $0x4] sm:$0xf]
      %v546 = vld [vmem:[%s507] sm:$0xf]
      %v547 = vld [vmem:[%s507 + $0x4] sm:$0xf]
      %v548 = vld [vmem:[%s507 + $0x8] sm:$0xf]
      %v549 = vld [vmem:[%s507 + $0xc] sm:$0xf]
      %v550 = vld [vmem:[%s510] sm:$0x1]
      %v552 = vlaneseq
      %v553 = vshrl.u32 %v552, 7
      %v554 = vsub.s32 0, %v553
      %v555 = vrot.slane %v550, %v554
      %v559 = vunpack.c.l.b16 %v544
      %v560 = vunpack.c.l.b16 %v545
      %v561 = vpack.c.b16 %v560, %v559
      %v566 = vunpack.c.l.b16 %v546
      %v567 = vunpack.c.l.b16 %v547
      %v568 = vunpack.c.l.b16 %v548
      %v569 = vunpack.c.l.b16 %v549
      %v570 = vpack.c.b16 %v567, %v566
      %v571 = vpack.c.b16 %v569, %v568
      %vm574 = vcmask 261120
      %v576 = vsel %vm574, %v561, 0
      %578 = vmatprep.subr.bf16.mxu0 0
      %579 = vmatpush1.bf16.msra.mxu0 %v570
      %580 = vmatprep.subr.bf16.mxu0 0
      %581 = vmatpush1.bf16.msra.mxu0 %v571
      %582 = vmatprep.subr.bf16.mxu0 0
      %583 = vmatpush1.bf16.msra.mxu0 0
      %584 = vmatprep.subr.bf16.mxu0 0
      %585 = vmatpush1.bf16.msra.mxu0 0
      %586 = vmatprep.subr.bf16.mxu0 0
      %587 = vmatpush1.bf16.msra.mxu0 0
      %588 = vmatprep.subr.bf16.mxu0 0
      %589 = vmatpush1.bf16.msra.mxu0 0
      %590 = vmatprep.subr.bf16.mxu0 0
      %591 = vmatpush1.bf16.msra.mxu0 0
      %592 = vmatprep.subr.bf16.mxu0 0
      %593 = vmatpush1.bf16.msra.mxu0 0
      %594 = vmatprep.subr.bf16.mxu0 0
      %595 = vmatpush1.bf16.msra.mxu0 0
      %596 = vmatprep.subr.bf16.mxu0 0
      %597 = vmatpush1.bf16.msra.mxu0 0
      %598 = vmatprep.subr.bf16.mxu0 0
      %599 = vmatpush1.bf16.msra.mxu0 0
      %600 = vmatprep.subr.bf16.mxu0 0
      %601 = vmatpush1.bf16.msra.mxu0 0
      %602 = vmatprep.subr.bf16.mxu0 0
      %603 = vmatpush1.bf16.msra.mxu0 0
      %604 = vmatprep.subr.bf16.mxu0 0
      %605 = vmatpush1.bf16.msra.mxu0 0
      %606 = vmatprep.subr.bf16.mxu0 0
      %607 = vmatpush1.bf16.msra.mxu0 0
      %608 = vmatprep.subr.bf16.mxu0 0
      %609 = vmatpush1.bf16.msra.mxu0 0
      %610 = vmatprep.mubr.bf16.mxu0 0
      %611 = vmatmul.mubr.bf16.gmra.mrb[0].mxu0 %v576
      %v612 = vpop.f32.mrb[0].mxu0
      %v613 = vadd.f32 %v555, %v612
      %v614 = vpop.f32.mrb[0].mxu0
      %v615 = vpop.f32.mrb[0].mxu0
      %v616 = vadd.f32 %v555, %v615
      %v617 = vpop.f32.mrb[0].mxu0
      %618 = vdwg.mxu0
      %v619 = vpack.c.bf16 %v616, %v613
      %v620 = vld [vmem:[%s515] sm:$0xf]
      %v621 = vld [vmem:[%s515 + $0x4] sm:$0xf]
      %v622 = vld [vmem:[%s515 + $0x8] sm:$0xf]
      %v623 = vld [vmem:[%s515 + $0xc] sm:$0xf]
      %v624 = vld [vmem:[%s518] sm:$0x1]
      %v626 = vlaneseq
      %v627 = vshrl.u32 %v626, 7
      %v628 = vsub.s32 0, %v627
      %v629 = vrot.slane %v624, %v628
      %v635 = vunpack.c.l.b16 %v620
      %v636 = vunpack.c.l.b16 %v621
      %v637 = vunpack.c.l.b16 %v622
      %v638 = vunpack.c.l.b16 %v623
      %v639 = vpack.c.b16 %v636, %v635
      %v640 = vpack.c.b16 %v638, %v637
      %v644 = vsel %vm574, %v619, 0
      %646 = vmatprep.subr.bf16.mxu0 0
      %647 = vmatpush1.bf16.msra.mxu0 %v639
      %648 = vmatprep.subr.bf16.mxu0 0
      %649 = vmatpush1.bf16.msra.mxu0 %v640
      %650 = vmatprep.subr.bf16.mxu0 0
      %651 = vmatpush1.bf16.msra.mxu0 0
      %652 = vmatprep.subr.bf16.mxu0 0
      %653 = vmatpush1.bf16.msra.mxu0 0
      %654 = vmatprep.subr.bf16.mxu0 0
      %655 = vmatpush1.bf16.msra.mxu0 0
      %656 = vmatprep.subr.bf16.mxu0 0
      %657 = vmatpush1.bf16.msra.mxu0 0
      %658 = vmatprep.subr.bf16.mxu0 0
      %659 = vmatpush1.bf16.msra.mxu0 0
      %660 = vmatprep.subr.bf16.mxu0 0
      %661 = vmatpush1.bf16.msra.mxu0 0
      %662 = vmatprep.subr.bf16.mxu0 0
      %663 = vmatpush1.bf16.msra.mxu0 0
      %664 = vmatprep.subr.bf16.mxu0 0
      %665 = vmatpush1.bf16.msra.mxu0 0
      %666 = vmatprep.subr.bf16.mxu0 0
      %667 = vmatpush1.bf16.msra.mxu0 0
      %668 = vmatprep.subr.bf16.mxu0 0
      %669 = vmatpush1.bf16.msra.mxu0 0
      %670 = vmatprep.subr.bf16.mxu0 0
      %671 = vmatpush1.bf16.msra.mxu0 0
      %672 = vmatprep.subr.bf16.mxu0 0
      %673 = vmatpush1.bf16.msra.mxu0 0
      %674 = vmatprep.subr.bf16.mxu0 0
      %675 = vmatpush1.bf16.msra.mxu0 0
      %676 = vmatprep.subr.bf16.mxu0 0
      %677 = vmatpush1.bf16.msra.mxu0 0
      %678 = vmatprep.mubr.bf16.mxu0 0
      %679 = vmatmul.mubr.bf16.gmra.mrb[0].mxu0 %v644
      %v680 = vpop.f32.mrb[0].mxu0
      %v681 = vadd.f32 %v629, %v680
      %v682 = vpop.f32.mrb[0].mxu0
      %v683 = vpop.f32.mrb[0].mxu0
      %v684 = vadd.f32 %v629, %v683
      %v685 = vpop.f32.mrb[0].mxu0
      %686 = vdwg.mxu0
      %v687 = vmax.f32 %v681, 0.0
      %v688 = vmax.f32 %v684, 0.0
      %v689 = vsel %vm574, %v687, 0.0
      %690 = vadd.xlane.f32.xlu0 %v689
      %v691 = vpop.xlane.xlu0 %690
      %v692 = vsel %vm574, %v688, 0.0
      %693 = vadd.xlane.f32.xlu0 %v692
      %v694 = vpop.xlane.xlu0 %693
      %v695 = vmul.f32 %v687, %v687
      %v696 = vmul.f32 %v688, %v688
      %v697 = vsel %vm574, %v695, 0.0
      %698 = vadd.xlane.f32.xlu0 %v697
      %v699 = vpop.xlane.xlu0 %698
      %v700 = vsel %vm574, %v696, 0.0
      %701 = vadd.xlane.f32.xlu0 %v700
      %v702 = vpop.xlane.xlu0 %701
      %v703 = vrcp.pop 32.0
      %v704 = vmul.f32 %v691, %v703
      %v705 = vmul.f32 %v694, %v703
      %v706 = vmul.f32 %v699, %v703
      %v707 = vmul.f32 %v702, %v703
      %v708 = vmul.f32 %v704, %v704
      %v709 = vmul.f32 %v705, %v705
      %v710 = vsub.f32 %v706, %v708
      %v711 = vsub.f32 %v707, %v709
      %v712 = vsub.f32 %v687, %v704
      %v713 = vsub.f32 %v688, %v705
      %v714 = vadd.f32 %v710, 1e-05
      %v715 = vadd.f32 %v711, 1e-05
      %v716 = vrsqrt.pop %v714
      %v717 = vrsqrt.pop %v715
      %v718 = vmul.f32 %v712, %v716
      %v719 = vmul.f32 %v713, %v717
      %v720 = vld [vmem:[%s521] sm:$0x1]
      %v722 = vlaneseq
      %v723 = vshrl.u32 %v722, 7
      %v724 = vsub.s32 0, %v723
      %v725 = vrot.slane %v720, %v724
      %v727 = vmul.f32 %v718, %v725
      %v728 = vmul.f32 %v719, %v725
      %v729 = vld [vmem:[%s524] sm:$0x1]
      %v731 = vlaneseq
      %v732 = vshrl.u32 %v731, 7
      %v733 = vsub.s32 0, %v732
      %v734 = vrot.slane %v729, %v733
      %v736 = vadd.f32 %v727, %v734
      %v737 = vadd.f32 %v728, %v734
      %v738 = vpack.c.bf16 %v737, %v736
      %v739 = vld [vmem:[%s529] sm:$0xf]
      %v740 = vld [vmem:[%s529 + $0x4] sm:$0xf]
      %v741 = vld [vmem:[%s529 + $0x8] sm:$0xf]
      %v742 = vld [vmem:[%s529 + $0xc] sm:$0xf]
      %v743 = vld [vmem:[%s532] sm:$0x1]
      %v745 = vlaneseq
      %v746 = vshrl.u32 %v745, 7
      %v747 = vsub.s32 0, %v746
      %v748 = vrot.slane %v743, %v747
      %v754 = vunpack.c.l.b16 %v739
      %v755 = vunpack.c.l.b16 %v740
      %v756 = vunpack.c.l.b16 %v741
      %v757 = vunpack.c.l.b16 %v742
      %v758 = vpack.c.b16 %v755, %v754
      %v759 = vpack.c.b16 %v757, %v756
      %v763 = vsel %vm574, %v738, 0
      %765 = vmatprep.subr.bf16.mxu0 0
      %766 = vmatpush1.bf16.msra.mxu0 %v758
      %767 = vmatprep.subr.bf16.mxu0 0
      %768 = vmatpush1.bf16.msra.mxu0 %v759
      %769 = vmatprep.subr.bf16.mxu0 0
      %770 = vmatpush1.bf16.msra.mxu0 0
      %771 = vmatprep.subr.bf16.mxu0 0
      %772 = vmatpush1.bf16.msra.mxu0 0
      %773 = vmatprep.subr.bf16.mxu0 0
      %774 = vmatpush1.bf16.msra.mxu0 0
      %775 = vmatprep.subr.bf16.mxu0 0
      %776 = vmatpush1.bf16.msra.mxu0 0
      %777 = vmatprep.subr.bf16.mxu0 0
      %778 = vmatpush1.bf16.msra.mxu0 0
      %779 = vmatprep.subr.bf16.mxu0 0
      %780 = vmatpush1.bf16.msra.mxu0 0
      %781 = vmatprep.subr.bf16.mxu0 0
      %782 = vmatpush1.bf16.msra.mxu0 0
      %783 = vmatprep.subr.bf16.mxu0 0
      %784 = vmatpush1.bf16.msra.mxu0 0
      %785 = vmatprep.subr.bf16.mxu0 0
      %786 = vmatpush1.bf16.msra.mxu0 0
      %787 = vmatprep.subr.bf16.mxu0 0
      %788 = vmatpush1.bf16.msra.mxu0 0
      %789 = vmatprep.subr.bf16.mxu0 0
      %790 = vmatpush1.bf16.msra.mxu0 0
      %791 = vmatprep.subr.bf16.mxu0 0
      %792 = vmatpush1.bf16.msra.mxu0 0
      %793 = vmatprep.subr.bf16.mxu0 0
      %794 = vmatpush1.bf16.msra.mxu0 0
      %795 = vmatprep.subr.bf16.mxu0 0
      %796 = vmatpush1.bf16.msra.mxu0 0
      %797 = vmatprep.mubr.bf16.mxu0 0
      %798 = vmatmul.mubr.bf16.gmra.mrb[0].mxu0 %v763
      %v799 = vpop.f32.mrb[0].mxu0
      %v800 = vadd.f32 %v748, %v799
      %v801 = vpop.f32.mrb[0].mxu0
      %v802 = vpop.f32.mrb[0].mxu0
      %v803 = vadd.f32 %v748, %v802
      %v804 = vpop.f32.mrb[0].mxu0
      %805 = vdwg.mxu0
      %v806 = vmul.f32 %v800, %v800
      %v807 = vmul.f32 %v803, %v803
      %v808 = vsel %vm574, %v806, 0.0
      %809 = vadd.xlane.f32.xlu0 %v808
      %v810 = vpop.xlane.xlu0 %809
      %v811 = vsel %vm574, %v807, 0.0
      %812 = vadd.xlane.f32.xlu0 %v811
      %v813 = vpop.xlane.xlu0 %812
      %v814 = vadd.f32 %v810, 1e-12
      %v815 = vadd.f32 %v813, 1e-12
      %v816 = vrsqrt.pop %v814
      %v817 = vrsqrt.pop %v815
      %v818 = vld [vmem:[%s502] sm:$0x1]
      %v820 = vlaneseq
      %v821 = vshrl.u32 %v820, 7
      %v822 = vsub.s32 0, %v821
      %v823 = vrot.slane %v818, %v822
      %v825 = vmul.f32 %v816, %v823
      %v826 = vmul.f32 %v817, %v823
      %828 = vset.pattern.permute.xlu0 0
      %829 = vperm.xlu0 %828, %v825
      %v830 = vpop.permute.xlu0 %829
      %833 = vset.pattern.permute.xlu0 0
      %834 = vperm.xlu0 %833, %v826
      %v835 = vpop.permute.xlu0 %834
      %v837 = vmul.f32 %v800, %v830
      %v838 = vmul.f32 %v803, %v835
      %v839 = vpack.c.bf16 %v838, %v837
      %v841 = vunpack.c.l.b16 %v839
      %v842 = vunpack.c.h.b16 %v839
      %v843 = vpack.c.b16 %v841, %v841
      %v844 = vpack.c.b16 %v842, %v842
      %vm847 = vcmask 257024
      %848 = vst.msk [vmem:[%s541] sm:$0xf] %vm847, %v843
      %849 = vst.msk [vmem:[%s541 + $0x4] sm:$0xf] %vm847, %v844
      %s850 = smul.u32 2, %s26
      %p851 = scmp.lt.s32.totalorder %s25, 1
      %s852 = scalar_select %p851, %s25, 1
      %p853 = scmp.lt.s32.totalorder %s850, 1
      %s854 = scalar_select %p853, %s850, 1
      %s855 = smul.addr %s852, 2
      %s856 = sadd.s32 %s854, %s855
      %s857 = smul.addr %s856, 4
      %s858 = scalar_lea.vmem %s10, %s857
      // Predicated region
      $region61: #{extended_filip_forward.2} parent=59 // pred_check
        %p859 = pneg %p315
      $region62: #{extended_filip_forward.2} parent=59 // pred_check_branch
        %861 = sbr.rel (%p859) target = $region64
      $region63: #{extended_filip_forward.2} parent=59 // pred_region
        %s862 = smul.u32 2, %s26
      $region64: #{extended_filip_forward.2} parent=59 // pred_fallthru
        _
    $region60: #{extended_filip_forward.2} parent=5 // pred_fallthru
      _
    %p863 = scmp.le.s32.totalorder 2, %s16
    // Predicated region
    $region65: #{extended_filip_forward.2} parent=5 // pred_check
      %p864 = pneg %p863
    $region66: #{extended_filip_forward.2} parent=5 // pred_check_branch
      %866 = sbr.rel (%p864) target = $region68
    $region67: #{extended_filip_forward.2} parent=5 // pred_region
      %s867 = ssub.s32 %s16, 2
      // Predicated region
      $region69: #{extended_filip_forward.2} parent=67 // pred_check
        %p868 = pneg %p321
      $region70: #{extended_filip_forward.2} parent=67 // pred_check_branch
        %870 = sbr.rel (%p868) target = $region72
      $region71: #{extended_filip_forward.2} parent=67 // pred_region
        %s871 = smul.u32 2, %s28
        %p872 = scmp.lt.s32.totalorder %s27, 1
        %s873 = scalar_select %p872, %s27, 1
        %p874 = scmp.lt.s32.totalorder %s871, 1
        %s875 = scalar_select %p874, %s871, 1
        %s876 = smul.addr %s873, 2
        %s877 = sadd.s32 %s875, %s876
        %s878 = smul.addr %s877, 4
        %s879 = scalar_lea.vmem %s10, %s878
      $region72: #{extended_filip_forward.2} parent=67 // pred_fallthru
        _
    $region68: #{extended_filip_forward.2} parent=5 // pred_fallthru
      _
  $region6: #{extended_filip_forward.2} parent=0 // loop_footer
    %s20 = sadd.s32 1, %s16
  $region7: #{extended_filip_forward.2} parent=0 // loop_footer_branch
    %15 = sbr.rel target = $region3
  $region8: #{extended_filip_forward.2} parent=0 // loop_exit
    _

</llo_original>
